<compile_context>
chip_gen: v6e
topology: v6e:2x2x1
jax: 0.10.0
libtpu: 0.0.40
codegen_flags: <defaults>
</compile_context>

<pallas_src>
import functools

import jax
import jax.numpy as jnp
from jax.experimental import pallas as pl
from jax.experimental.pallas import tpu as pltpu


def _round_up(x, m):
    return ((x + m - 1) // m) * m


def _bert_self_output_kernel(h_ref, x_ref, w_ref, p_ref, o_ref, *, eps):
    # Dense projection on the MXU; operands may be bf16, accumulate in f32.
    y = jnp.dot(h_ref[...], w_ref[...], preferred_element_type=jnp.float32)

    p = p_ref[...].astype(jnp.float32)                  # (3, D): bias, gamma, beta
    bias, gamma, beta = p[0:1, :], p[1:2, :], p[2:3, :]

    # Dropout (eval mode) == identity; residual add in f32.
    z = y + bias + x_ref[...].astype(jnp.float32)

    # LayerNorm over the hidden (lane) axis, single-pass stats in f32:
    #   var = E[z^2] - mean^2   (halves cross-lane reductions, breaks the
    #   mean -> center serial dependency; numerically safe in f32 here).
    mean = jnp.mean(z, axis=-1, keepdims=True)
    mean_sq = jnp.mean(z * z, axis=-1, keepdims=True)
    var = jnp.maximum(mean_sq - mean * mean, 0.0)
    inv = jax.lax.rsqrt(var + eps)                      # EUP rsqrt, off the VALU slots
    o_ref[...] = ((z - mean) * inv * gamma + beta).astype(o_ref.dtype)


def _vmem_estimate(tm, D, h_dt, x_dt, o_dt, w_dt, w_bufs):
    isz = lambda dt: jnp.dtype(dt).itemsize
    rows = 2 * tm * D * (isz(h_dt) + isz(x_dt) + isz(o_dt))   # double-buffered streams
    weight = w_bufs * D * D * isz(w_dt)
    params = w_bufs * 3 * D * 4
    return rows + weight + params


def _pick_tm(N, D, tm_req, h_dt, x_dt, o_dt, w_dt, vmem_budget):
    tm = max(8, min(tm_req, _round_up(N, 8)))
    tm = (tm // 8) * 8
    # Keep >= 2 grid steps when the row count allows it so the "parallel"
    # grid axis can shard across both TensorCores on v7x.
    if pl.cdiv(N, tm) < 2 and N >= 16:
        tm = _round_up(pl.cdiv(N, 2), 8)
    # Shrink to the VMEM budget (conservative estimate assumes double-buffered
    # weight, so the Buffered(1) fallback path still fits).
    while tm > 8 and _vmem_estimate(tm, D, h_dt, x_dt, o_dt, w_dt, 2) > vmem_budget:
        tm = max(8, ((tm // 2) // 8) * 8)
    return tm


def bert_self_output(hidden_states, input_tensor, w, b, gamma, beta, *,
                     eps=1e-5, tm=512, compute_dtype=None, out_dtype=None,
                     vmem_budget_bytes=40 * 1024 * 1024):
    """Fused dense + residual + LayerNorm (BertSelfOutput forward, eval mode).

    hidden_states / input_tensor: (..., D).
    w: (D, D) = torch nn.Linear weight TRANSPOSED (stored (in, out)).
    b / gamma / beta: (D,).  eps matches torch nn.LayerNorm default (1e-5);
    pass config.layer_norm_eps (e.g. 1e-12 for HF BERT) if needed.
    compute_dtype: optional dtype (e.g. jnp.bfloat16) for the streamed matmul
    operands; accumulation and LayerNorm statistics stay in f32.
    """
    orig_shape = hidden_states.shape
    D = orig_shape[-1]
    out_dtype = out_dtype or hidden_states.dtype

    h2 = hidden_states.reshape(-1, D)
    x2 = input_tensor.reshape(-1, D)
    if compute_dtype is not None:
        h2 = h2.astype(compute_dtype)
        x2 = x2.astype(compute_dtype)
        w = w.astype(compute_dtype)
    N = h2.shape[0]

    tm = _pick_tm(N, D, tm, h2.dtype, x2.dtype, out_dtype, w.dtype,
                  vmem_budget_bytes)

    # Pad rows to a multiple of the tile instead of asserting divisibility.
    n_pad = _round_up(N, tm)
    if n_pad != N:
        h2 = jnp.pad(h2, ((0, n_pad - N), (0, 0)))
        x2 = jnp.pad(x2, ((0, n_pad - N), (0, 0)))
    grid = (n_pad // tm,)

    # bias / gamma / beta packed into one resident (3, D) f32 operand.
    params = jnp.stack([b, gamma, beta], axis=0).astype(jnp.float32)

    kernel = functools.partial(_bert_self_output_kernel, eps=eps)
    row_spec = pl.BlockSpec((tm, D), lambda i: (i, 0))            # streamed tiles
    vmem_limit = int(min(
        max(_vmem_estimate(tm, D, h2.dtype, x2.dtype, out_dtype, w.dtype, 2)
            + (8 << 20), 32 << 20),
        56 << 20))                                                 # < v7x 64 MiB physical

    def _run(single_buffer_invariants):
        if single_buffer_invariants:
            # Grid-invariant operands: constant index_map -> one VMEM copy,
            # no wasteful double buffer (frees VMEM for bigger row tiles).
            w_spec = pl.BlockSpec((D, D), lambda i: (0, 0),
                                  pipeline_mode=pl.Buffered(1))
            p_spec = pl.BlockSpec((3, D), lambda i: (0, 0),
                                  pipeline_mode=pl.Buffered(1))
        else:
            w_spec = pl.BlockSpec((D, D), lambda i: (0, 0))
            p_spec = pl.BlockSpec((3, D), lambda i: (0, 0))
        return pl.pallas_call(
            kernel,
            out_shape=jax.ShapeDtypeStruct((n_pad, D), out_dtype),
            grid_spec=pltpu.PrefetchScalarGridSpec(
                num_scalar_prefetch=0,
                grid=grid,
                in_specs=[row_spec, row_spec, w_spec, p_spec],
                out_specs=row_spec,
            ),
            compiler_params=pltpu.CompilerParams(
                dimension_semantics=("parallel",),   # shard row tiles across TCs
                vmem_limit_bytes=vmem_limit,
            ),
        )(h2, x2, w, params)

    try:
        out2 = _run(True)
    except Exception:
        # TODO(synk): pl.Buffered(1) pipeline_mode rejected on this jax build;
        # fall back to default double-buffering of the invariant operands.
        out2 = _run(False)

    return out2[:N].reshape(orig_shape)


def _reference(hidden_states, input_tensor, w, b, gamma, beta, *, eps=1e-5):
    y = hidden_states @ w + b
    z = y + input_tensor
    mean = z.mean(axis=-1, keepdims=True)
    var = ((z - mean) ** 2).mean(axis=-1, keepdims=True)
    return (z - mean) / jnp.sqrt(var + eps) * gamma + beta


if __name__ == "__main__":
    # Small module-consistent config. D is lane-dense (multiple of 128);
    # seq=100 makes batch*seq NOT tile-divisible to exercise the padding path,
    # and the auto-picked tile keeps >=2 grid steps for the parallel axis.
    B, S, D = 2, 100, 256

    key = jax.random.PRNGKey(0)
    ks = jax.random.split(key, 6)
    hidden_states = jax.random.normal(ks[0], (B, S, D), dtype=jnp.float32)
    input_tensor = jax.random.normal(ks[1], (B, S, D), dtype=jnp.float32)

    # Parameters (w stored as (D_in, D_out) == torch Linear weight transposed).
    w = jax.random.normal(ks[2], (D, D), dtype=jnp.float32) * 0.05
    b = jax.random.normal(ks[3], (D,), dtype=jnp.float32) * 0.01
    gamma = 1.0 + jax.random.normal(ks[4], (D,), dtype=jnp.float32) * 0.01
    beta = jax.random.normal(ks[5], (D,), dtype=jnp.float32) * 0.01

    ref = _reference(hidden_states, input_tensor, w, b, gamma, beta)

    # f32 path.
    out_f32 = jax.block_until_ready(
        bert_self_output(hidden_states, input_tensor, w, b, gamma, beta))
    assert out_f32.shape == (B, S, D)
    assert jnp.allclose(out_f32, ref, atol=1e-4, rtol=1e-4), "f32 mismatch vs reference"

    # bf16 streamed operands (halves HBM traffic); f32 accumulation + LN stats.
    out_bf16 = jax.block_until_ready(
        bert_self_output(hidden_states, input_tensor, w, b, gamma, beta,
                         compute_dtype=jnp.bfloat16))
    assert jnp.allclose(out_bf16.astype(jnp.float32), ref, atol=5e-2, rtol=5e-2), \
        "bf16 mismatch vs reference"

    print("KERNEL_OK")
</pallas_src>

<mosaic_0001>
module attributes {stable_mosaic.version = 11 : i64} {
  func.func @_bert_self_output_kernel(%arg0: i32, %arg1: memref<104x256xf32, #tpu.memory_space<vmem>>, %arg2: memref<104x256xf32, #tpu.memory_space<vmem>>, %arg3: memref<256x256xf32, #tpu.memory_space<vmem>>, %arg4: memref<3x256xf32, #tpu.memory_space<vmem>>, %arg5: memref<104x256xf32, #tpu.memory_space<vmem>>) attributes {dimension_semantics = [#tpu.dimension_semantics<parallel>], iteration_bounds = array<i64: 2>, scalar_prefetch = 0 : i64, scratch_operands = 0 : i64, tpu.core_type = #tpu.core_type<tc>, window_params = [{transform_indices = @transform_0, window_bounds = array<i64: 104, 256>}, {transform_indices = @transform_1, window_bounds = array<i64: 104, 256>}, {pipeline_mode = #tpu.pipeline_mode<synchronous>, transform_indices = @transform_2, window_bounds = array<i64: 256, 256>}, {pipeline_mode = #tpu.pipeline_mode<synchronous>, transform_indices = @transform_3, window_bounds = array<i64: 3, 256>}, {transform_indices = @transform_4, window_bounds = array<i64: 104, 256>}]} {
    %c0 = arith.constant 0 : index
    %c0_0 = arith.constant 0 : index
    %0 = vector.load %arg1[%c0, %c0_0] : memref<104x256xf32, #tpu.memory_space<vmem>>, vector<104x256xf32>
    %c0_1 = arith.constant 0 : index
    %c0_2 = arith.constant 0 : index
    %1 = vector.load %arg3[%c0_1, %c0_2] : memref<256x256xf32, #tpu.memory_space<vmem>>, vector<256x256xf32>
    %cst = arith.constant dense<0.000000e+00> : vector<104x256xf32>
    %2 = tpu.matmul %0, %1, %cst {dimension_numbers = #tpu.dot_dimension_numbers<[1], [0], [0], [1], [0, 0, 1, 1], [], []>} : vector<104x256xf32>, vector<256x256xf32>, vector<104x256xf32> -> vector<104x256xf32>
    %c0_3 = arith.constant 0 : index
    %c0_4 = arith.constant 0 : index
    %3 = vector.load %arg4[%c0_3, %c0_4] : memref<3x256xf32, #tpu.memory_space<vmem>>, vector<3x256xf32>
    %4 = vector.extract_strided_slice %3 {offsets = [0, 0], sizes = [1, 256], strides = [1, 1]} : vector<3x256xf32> to vector<1x256xf32>
    %5 = vector.extract_strided_slice %3 {offsets = [1, 0], sizes = [1, 256], strides = [1, 1]} : vector<3x256xf32> to vector<1x256xf32>
    %6 = vector.extract_strided_slice %3 {offsets = [2, 0], sizes = [1, 256], strides = [1, 1]} : vector<3x256xf32> to vector<1x256xf32>
    %7 = vector.broadcast %4 : vector<1x256xf32> to vector<104x256xf32>
    %8 = arith.addf %2, %7 : vector<104x256xf32>
    %c0_5 = arith.constant 0 : index
    %c0_6 = arith.constant 0 : index
    %9 = vector.load %arg2[%c0_5, %c0_6] : memref<104x256xf32, #tpu.memory_space<vmem>>, vector<104x256xf32>
    %10 = arith.addf %8, %9 : vector<104x256xf32>
    %cst_7 = arith.constant dense<0.000000e+00> : vector<104xf32>
    %11 = vector.multi_reduction <add>, %10, %cst_7 [1] : vector<104x256xf32> to vector<104xf32>
    %12 = vector.shape_cast %11 : vector<104xf32> to vector<104x1xf32>
    %cst_8 = arith.constant 2.560000e+02 : f32
    %13 = vector.broadcast %cst_8 : f32 to vector<104x1xf32>
    %14 = arith.divf %12, %13 : vector<104x1xf32>
    %15 = arith.mulf %10, %10 : vector<104x256xf32>
    %cst_9 = arith.constant dense<0.000000e+00> : vector<104xf32>
    %16 = vector.multi_reduction <add>, %15, %cst_9 [1] : vector<104x256xf32> to vector<104xf32>
    %17 = vector.shape_cast %16 : vector<104xf32> to vector<104x1xf32>
    %cst_10 = arith.constant 2.560000e+02 : f32
    %18 = vector.broadcast %cst_10 : f32 to vector<104x1xf32>
    %19 = arith.divf %17, %18 : vector<104x1xf32>
    %20 = arith.mulf %14, %14 : vector<104x1xf32>
    %21 = arith.subf %19, %20 : vector<104x1xf32>
    %cst_11 = arith.constant 0.000000e+00 : f32
    %22 = vector.broadcast %cst_11 : f32 to vector<104x1xf32>
    %23 = arith.maximumf %21, %22 : vector<104x1xf32>
    %cst_12 = arith.constant 9.99999974E-6 : f32
    %24 = vector.broadcast %cst_12 : f32 to vector<104x1xf32>
    %25 = arith.addf %23, %24 : vector<104x1xf32>
    %26 = math.rsqrt %25 : vector<104x1xf32>
    %27 = vector.broadcast %14 : vector<104x1xf32> to vector<104x256xf32>
    %28 = arith.subf %10, %27 : vector<104x256xf32>
    %29 = vector.broadcast %26 : vector<104x1xf32> to vector<104x256xf32>
    %30 = arith.mulf %28, %29 : vector<104x256xf32>
    %31 = vector.broadcast %5 : vector<1x256xf32> to vector<104x256xf32>
    %32 = arith.mulf %30, %31 : vector<104x256xf32>
    %33 = vector.broadcast %6 : vector<1x256xf32> to vector<104x256xf32>
    %34 = arith.addf %32, %33 : vector<104x256xf32>
    %c0_13 = arith.constant 0 : index
    %c0_14 = arith.constant 0 : index
    %35 = vector.load %arg5[%c0_13, %c0_14] : memref<104x256xf32, #tpu.memory_space<vmem>>, vector<104x256xf32>
    tpu.vector_store %arg5[%c0_13, %c0_14], %34 {strides = array<i32>} : memref<104x256xf32, #tpu.memory_space<vmem>>, vector<104x256xf32>,
    return
  }
  func.func @transform_0(%arg0: i32) -> (i32, i32) {
    %c0_i32 = arith.constant 0 : i32
    %c0_i32_0 = arith.constant 0 : i32
    return %arg0, %c0_i32 : i32, i32
  }
  func.func @transform_1(%arg0: i32) -> (i32, i32) {
    %c0_i32 = arith.constant 0 : i32
    %c0_i32_0 = arith.constant 0 : i32
    return %arg0, %c0_i32 : i32, i32
  }
  func.func @transform_2(%arg0: i32) -> (i32, i32) {
    %c0_i32 = arith.constant 0 : i32
    %c0_i32_0 = arith.constant 0 : i32
    %c0_i32_1 = arith.constant 0 : i32
    return %c0_i32, %c0_i32_0 : i32, i32
  }
  func.func @transform_3(%arg0: i32) -> (i32, i32) {
    %c0_i32 = arith.constant 0 : i32
    %c0_i32_0 = arith.constant 0 : i32
    %c0_i32_1 = arith.constant 0 : i32
    return %c0_i32, %c0_i32_0 : i32, i32
  }
  func.func @transform_4(%arg0: i32) -> (i32, i32) {
    %c0_i32 = arith.constant 0 : i32
    %c0_i32_0 = arith.constant 0 : i32
    return %arg0, %c0_i32 : i32, i32
  }
}

module attributes {stable_mosaic.version = 11 : i64} {
  func.func @_bert_self_output_kernel(%arg0: i32, %arg1: memref<104x256xf32, #tpu.memory_space<vmem>>, %arg2: memref<104x256xf32, #tpu.memory_space<vmem>>, %arg3: memref<256x256xf32, #tpu.memory_space<vmem>>, %arg4: memref<3x256xf32, #tpu.memory_space<vmem>>, %arg5: memref<104x256xf32, #tpu.memory_space<vmem>>) attributes {dimension_semantics = [#tpu.dimension_semantics<parallel>], iteration_bounds = array<i64: 2>, scalar_prefetch = 0 : i64, scratch_operands = 0 : i64, tpu.core_type = #tpu.core_type<tc>, window_params = [{transform_indices = @transform_0, window_bounds = array<i64: 104, 256>}, {transform_indices = @transform_1, window_bounds = array<i64: 104, 256>}, {pipeline_mode = #tpu.pipeline_mode<synchronous>, transform_indices = @transform_2, window_bounds = array<i64: 256, 256>}, {pipeline_mode = #tpu.pipeline_mode<synchronous>, transform_indices = @transform_3, window_bounds = array<i64: 3, 256>}, {transform_indices = @transform_4, window_bounds = array<i64: 104, 256>}]} {
    %c0 = arith.constant 0 : index
    %c0_0 = arith.constant 0 : index
    %0 = vector.load %arg1[%c0, %c0_0] : memref<104x256xf32, #tpu.memory_space<vmem>>, vector<104x256xf32>
    %c0_1 = arith.constant 0 : index
    %c0_2 = arith.constant 0 : index
    %1 = vector.load %arg3[%c0_1, %c0_2] : memref<256x256xf32, #tpu.memory_space<vmem>>, vector<256x256xf32>
    %cst = arith.constant dense<0.000000e+00> : vector<104x256xf32>
    %2 = tpu.matmul %0, %1, %cst {dimension_numbers = #tpu.dot_dimension_numbers<[1], [0], [0], [1], [0, 0, 1, 1], [], []>} : vector<104x256xf32>, vector<256x256xf32>, vector<104x256xf32> -> vector<104x256xf32>
    %c0_3 = arith.constant 0 : index
    %c0_4 = arith.constant 0 : index
    %3 = vector.load %arg4[%c0_3, %c0_4] : memref<3x256xf32, #tpu.memory_space<vmem>>, vector<3x256xf32>
    %4 = vector.extract_strided_slice %3 {offsets = [0, 0], sizes = [1, 256], strides = [1, 1]} : vector<3x256xf32> to vector<1x256xf32>
    %5 = vector.extract_strided_slice %3 {offsets = [1, 0], sizes = [1, 256], strides = [1, 1]} : vector<3x256xf32> to vector<1x256xf32>
    %6 = vector.extract_strided_slice %3 {offsets = [2, 0], sizes = [1, 256], strides = [1, 1]} : vector<3x256xf32> to vector<1x256xf32>
    %7 = vector.broadcast %4 : vector<1x256xf32> to vector<104x256xf32>
    %8 = arith.addf %2, %7 : vector<104x256xf32>
    %c0_5 = arith.constant 0 : index
    %c0_6 = arith.constant 0 : index
    %9 = vector.load %arg2[%c0_5, %c0_6] : memref<104x256xf32, #tpu.memory_space<vmem>>, vector<104x256xf32>
    %10 = arith.addf %8, %9 : vector<104x256xf32>
    %cst_7 = arith.constant dense<0.000000e+00> : vector<104xf32>
    %11 = vector.multi_reduction <add>, %10, %cst_7 [1] : vector<104x256xf32> to vector<104xf32>
    %12 = vector.shape_cast %11 : vector<104xf32> to vector<104x1xf32>
    %cst_8 = arith.constant 2.560000e+02 : f32
    %13 = vector.broadcast %cst_8 : f32 to vector<104x1xf32>
    %14 = arith.divf %12, %13 : vector<104x1xf32>
    %15 = arith.mulf %10, %10 : vector<104x256xf32>
    %cst_9 = arith.constant dense<0.000000e+00> : vector<104xf32>
    %16 = vector.multi_reduction <add>, %15, %cst_9 [1] : vector<104x256xf32> to vector<104xf32>
    %17 = vector.shape_cast %16 : vector<104xf32> to vector<104x1xf32>
    %cst_10 = arith.constant 2.560000e+02 : f32
    %18 = vector.broadcast %cst_10 : f32 to vector<104x1xf32>
    %19 = arith.divf %17, %18 : vector<104x1xf32>
    %20 = arith.mulf %14, %14 : vector<104x1xf32>
    %21 = arith.subf %19, %20 : vector<104x1xf32>
    %cst_11 = arith.constant 0.000000e+00 : f32
    %22 = vector.broadcast %cst_11 : f32 to vector<104x1xf32>
    %23 = arith.maximumf %21, %22 : vector<104x1xf32>
    %cst_12 = arith.constant 9.99999974E-6 : f32
    %24 = vector.broadcast %cst_12 : f32 to vector<104x1xf32>
    %25 = arith.addf %23, %24 : vector<104x1xf32>
    %26 = math.rsqrt %25 : vector<104x1xf32>
    %27 = vector.broadcast %14 : vector<104x1xf32> to vector<104x256xf32>
    %28 = arith.subf %10, %27 : vector<104x256xf32>
    %29 = vector.broadcast %26 : vector<104x1xf32> to vector<104x256xf32>
    %30 = arith.mulf %28, %29 : vector<104x256xf32>
    %31 = vector.broadcast %5 : vector<1x256xf32> to vector<104x256xf32>
    %32 = arith.mulf %30, %31 : vector<104x256xf32>
    %33 = vector.broadcast %6 : vector<1x256xf32> to vector<104x256xf32>
    %34 = arith.addf %32, %33 : vector<104x256xf32>
    %c0_13 = arith.constant 0 : index
    %c0_14 = arith.constant 0 : index
    %35 = vector.load %arg5[%c0_13, %c0_14] : memref<104x256xf32, #tpu.memory_space<vmem>>, vector<104x256xf32>
    tpu.vector_store %arg5[%c0_13, %c0_14], %34 {strides = array<i32>} : memref<104x256xf32, #tpu.memory_space<vmem>>, vector<104x256xf32>,
    return
  }
  func.func @transform_0(%arg0: i32) -> (i32, i32) {
    %c0_i32 = arith.constant 0 : i32
    %c0_i32_0 = arith.constant 0 : i32
    return %arg0, %c0_i32 : i32, i32
  }
  func.func @transform_1(%arg0: i32) -> (i32, i32) {
    %c0_i32 = arith.constant 0 : i32
    %c0_i32_0 = arith.constant 0 : i32
    return %arg0, %c0_i32 : i32, i32
  }
  func.func @transform_2(%arg0: i32) -> (i32, i32) {
    %c0_i32 = arith.constant 0 : i32
    %c0_i32_0 = arith.constant 0 : i32
    %c0_i32_1 = arith.constant 0 : i32
    return %c0_i32, %c0_i32_0 : i32, i32
  }
  func.func @transform_3(%arg0: i32) -> (i32, i32) {
    %c0_i32 = arith.constant 0 : i32
    %c0_i32_0 = arith.constant 0 : i32
    %c0_i32_1 = arith.constant 0 : i32
    return %c0_i32, %c0_i32_0 : i32, i32
  }
  func.func @transform_4(%arg0: i32) -> (i32, i32) {
    %c0_i32 = arith.constant 0 : i32
    %c0_i32_0 = arith.constant 0 : i32
    return %arg0, %c0_i32 : i32, i32
  }
}

</mosaic_0001>

<llo_original>
// kernel: tpu_custom_call.1
$region0: #{tpu_custom_call.1}
  #allocation0 [shape = 'u32[]', space=smem, size = 0x4, offset = 0x4, fixed_abs, tag = 'smem constant byte address 0x4 - core index']
  #allocation1 [shape = 'u32[144,128]{1,0:T(1,128)}', space=vmem, size = 0x12000, scoped, tag = 'internal scratch']
  %s0 = inlined_call_operand.hbm [shape: f32[208,256], index: 0, kind: input, shape index: {}]
  %s1 = inlined_call_operand.hbm [shape: f32[208,256], index: 1, kind: input, shape index: {}]
  %s2 = inlined_call_operand.hbm [shape: f32[256,256], index: 2, kind: input, shape index: {}]
  %s3 = inlined_call_operand.hbm [shape: f32[3,256], index: 3, kind: input, shape index: {}]
  %s4 = inlined_call_operand.hbm [shape: f32[208,256], index: 4, kind: output, shape index: {}]
  %s5 = sld [smem:[#allocation0]]
  $region65: #{tpu_custom_call.1} parent=0
    _
  %s7 = ssub.s32 1, %s5
  %s8 = scalar_select 0, %s7, %s5
  $region1: #{tpu_custom_call.1} parent=0
    #allocation2 [shape = 'u8[212992]{0}', space=vmem, size = 0x34000, scoped, tag = 'input window, operand 0']
    #allocation3 [shape = 's32[2]{0}', space=sflag, size = 0x8, scoped, tag = 'scoped memory for tpu_custom_call.1']
    #allocation4 [shape = 's32[2]{0}', space=sflag, size = 0x8, scoped, tag = 'scoped memory for tpu_custom_call.1']
    #allocation5 [shape = 'u8[212992]{0}', space=vmem, size = 0x34000, scoped, tag = 'input window, operand 1']
    #allocation6 [shape = 's32[2]{0}', space=sflag, size = 0x8, scoped, tag = 'scoped memory for tpu_custom_call.1']
    #allocation7 [shape = 'u8[262144]{0}', space=vmem, size = 0x40000, scoped, tag = 'input window, operand 2, single buffered']
    #allocation8 [shape = 'u8[4096]{0}', space=vmem, size = 0x1000, scoped, tag = 'input window, operand 3, single buffered']
    #allocation9 [shape = 's32[1]{0}', space=sflag, size = 0x4, scoped, tag = 'scoped memory for tpu_custom_call.1']
    #allocation10 [shape = 'u8[212992]{0}', space=vmem, size = 0x34000, scoped, tag = 'output window, operand 0']
    %9 = vsyncpa [#allocation3], 0
    %s10 = scalar_lea.sflag [#allocation3], 1
    %11 = vsyncpa %s10, 0
    %12 = vsyncpa [#allocation6], 0
    %s13 = scalar_lea.sflag [#allocation6], 1
    %14 = vsyncpa %s13, 0
    %15 = vsyncpa [#allocation9], 0
    %16 = vsyncpa [#allocation4], 0
    %s17 = scalar_lea.sflag [#allocation4], 1
    %18 = vsyncpa %s17, 0
    loop: start=0, step=1, limit=4
    $region2: #{tpu_custom_call.1} parent=1 // loop_pre_header
      _
    $region3: #{tpu_custom_call.1} parent=1 // loop_header
      %s20 = sphi 0, %s24
      %p21 = scmp.ge.s32.totalorder %s20, 4
      %s30 = sphi 0, %s32
      %s33 = sphi 0, %s30
      %s34 = sphi 0, %s33
      %s50 = sphi 0, %s34
      %s56 = sphi 0, %s58
      %s59 = sphi 0, %s56
      %s60 = sphi 0, %s59
      %s76 = sphi 0, %s60
      %s80 = sphi 0, %s80
      %s82 = sphi 0, %s80
      %s83 = sphi 0, %s82
      %s97 = sphi 0, %s83
      %s101 = sphi 0, %s101
      %s103 = sphi 0, %s101
      %s104 = sphi 0, %s103
      %s118 = sphi 0, %s104
      %s124 = sphi 0, %s126
      %s127 = sphi 0, %s124
      %s128 = sphi 0, %s127
      %s144 = sphi 0, %s128
    $region4: #{tpu_custom_call.1} parent=1 // loop_header_branch
      %23 = sbr.rel (%p21) target = $region8
    $region5: #{tpu_custom_call.1} parent=1 // loop_body
      %s25 = ssub.s32 %s20, 1
      %s26 = ssub.s32 %s20, 2
      %s27 = sadd.s32 %s20, 1
      %s28 = ssub.s32 %s20, %s27
      %p29 = scmp.eq.s32.totalorder %s28, 0
      %s31 = sadd.s32 %s30, 1
      %s32 = scalar_select %p29, %s30, %s31
      %p35 = pneg %p29
      %p36 = scmp.eq.s32.totalorder %s20, 1
      %p37 = por %p35, %p36
      %p38 = scmp.ne.s32.totalorder %s30, %s33
      %p39 = scmp.eq.s32.totalorder %s20, 0
      %p40 = por %p38, %p39
      %p41 = scmp.ne.s32.totalorder %s30, %s33
      %p42 = scmp.eq.s32.totalorder %s25, 1
      %p43 = por %p41, %p42
      %p44 = scmp.ne.s32.totalorder %s33, %s34
      %p45 = scmp.eq.s32.totalorder %s25, 0
      %p46 = por %p44, %p45
      %p47 = scmp.ne.s32.totalorder %s33, %s34
      %p48 = scmp.eq.s32.totalorder %s26, 1
      %p49 = por %p47, %p48
      %p51 = scmp.ne.s32.totalorder %s34, %s50
      %p52 = scmp.eq.s32.totalorder %s26, 0
      %p53 = por %p51, %p52
      %s54 = ssub.s32 %s20, %s27
      %p55 = scmp.eq.s32.totalorder %s54, 0
      %s57 = sadd.s32 %s56, 1
      %s58 = scalar_select %p55, %s56, %s57
      %p61 = pneg %p55
      %p62 = scmp.eq.s32.totalorder %s20, 1
      %p63 = por %p61, %p62
      %p64 = scmp.ne.s32.totalorder %s56, %s59
      %p65 = scmp.eq.s32.totalorder %s20, 0
      %p66 = por %p64, %p65
      %p67 = scmp.ne.s32.totalorder %s56, %s59
      %p68 = scmp.eq.s32.totalorder %s25, 1
      %p69 = por %p67, %p68
      %p70 = scmp.ne.s32.totalorder %s59, %s60
      %p71 = scmp.eq.s32.totalorder %s25, 0
      %p72 = por %p70, %p71
      %p73 = scmp.ne.s32.totalorder %s59, %s60
      %p74 = scmp.eq.s32.totalorder %s26, 1
      %p75 = por %p73, %p74
      %p77 = scmp.ne.s32.totalorder %s60, %s76
      %p78 = scmp.eq.s32.totalorder %s26, 0
      %p79 = por %p77, %p78
      %s81 = sadd.s32 %s80, 1
      %p84 = scmp.eq.s32.totalorder %s20, 1
      %p85 = scmp.ne.s32.totalorder %s80, %s82
      %p86 = scmp.eq.s32.totalorder %s20, 0
      %p87 = por %p85, %p86
      %p88 = scmp.ne.s32.totalorder %s80, %s82
      %p89 = scmp.eq.s32.totalorder %s25, 1
      %p90 = por %p88, %p89
      %p91 = scmp.ne.s32.totalorder %s82, %s83
      %p92 = scmp.eq.s32.totalorder %s25, 0
      %p93 = por %p91, %p92
      %p94 = scmp.ne.s32.totalorder %s82, %s83
      %p95 = scmp.eq.s32.totalorder %s26, 1
      %p96 = por %p94, %p95
      %p98 = scmp.ne.s32.totalorder %s83, %s97
      %p99 = scmp.eq.s32.totalorder %s26, 0
      %p100 = por %p98, %p99
      %s102 = sadd.s32 %s101, 1
      %p105 = scmp.eq.s32.totalorder %s20, 1
      %p106 = scmp.ne.s32.totalorder %s101, %s103
      %p107 = scmp.eq.s32.totalorder %s20, 0
      %p108 = por %p106, %p107
      %p109 = scmp.ne.s32.totalorder %s101, %s103
      %p110 = scmp.eq.s32.totalorder %s25, 1
      %p111 = por %p109, %p110
      %p112 = scmp.ne.s32.totalorder %s103, %s104
      %p113 = scmp.eq.s32.totalorder %s25, 0
      %p114 = por %p112, %p113
      %p115 = scmp.ne.s32.totalorder %s103, %s104
      %p116 = scmp.eq.s32.totalorder %s26, 1
      %p117 = por %p115, %p116
      %p119 = scmp.ne.s32.totalorder %s104, %s118
      %p120 = scmp.eq.s32.totalorder %s26, 0
      %p121 = por %p119, %p120
      %s122 = ssub.s32 %s20, %s27
      %p123 = scmp.eq.s32.totalorder %s122, 0
      %s125 = sadd.s32 %s124, 1
      %s126 = scalar_select %p123, %s124, %s125
      %p129 = pneg %p123
      %p130 = scmp.eq.s32.totalorder %s20, 1
      %p131 = por %p129, %p130
      %p132 = scmp.ne.s32.totalorder %s124, %s127
      %p133 = scmp.eq.s32.totalorder %s20, 0
      %p134 = por %p132, %p133
      %p135 = scmp.ne.s32.totalorder %s124, %s127
      %p136 = scmp.eq.s32.totalorder %s25, 1
      %p137 = por %p135, %p136
      %p138 = scmp.ne.s32.totalorder %s127, %s128
      %p139 = scmp.eq.s32.totalorder %s25, 0
      %p140 = por %p138, %p139
      %p141 = scmp.ne.s32.totalorder %s127, %s128
      %p142 = scmp.eq.s32.totalorder %s26, 1
      %p143 = por %p141, %p142
      %p145 = scmp.ne.s32.totalorder %s128, %s144
      %p146 = scmp.eq.s32.totalorder %s26, 0
      %p147 = por %p145, %p146
      %p148 = scmp.le.s32.totalorder 1, %s20
      %p149 = scmp.lt.s32.totalorder %s20, 3
      %p150 = pnand %p148, %p149
      %p151 = pneg %p150
      // Predicated region
      $region9: #{tpu_custom_call.1} parent=5 // pred_check
        _
      $region10: #{tpu_custom_call.1} parent=5 // pred_check_branch
        %153 = sbr.rel (%p150) target = $region12
      $region11: #{tpu_custom_call.1} parent=5 // pred_region
        %s154 = ssub.s32 %s20, 1
        // Predicated region
        $region13: #{tpu_custom_call.1} parent=11 // pred_check
          %p155 = pneg %p93
        $region14: #{tpu_custom_call.1} parent=11 // pred_check_branch
          %157 = sbr.rel (%p155) target = $region16
        $region15: #{tpu_custom_call.1} parent=11 // pred_region
          %s159 = ssub.s32 8192, 8192
          %160 = vsyncadd [#allocation6], %s159
          %s161 = sshll.u32 [#allocation7], 4
          %s162 = int_to_ptr.vmem [resolvable:$true] %s161
          %167 = dma.hbm_to_vmem [thread:$0]  %s2, 8192, %s162, [#allocation6], 256, 256, 16
        $region16: #{tpu_custom_call.1} parent=11 // pred_fallthru
          _
        // Predicated region
        $region17: #{tpu_custom_call.1} parent=11 // pred_check
          %p168 = pneg %p114
        $region18: #{tpu_custom_call.1} parent=11 // pred_check_branch
          %170 = sbr.rel (%p168) target = $region20
        $region19: #{tpu_custom_call.1} parent=11 // pred_region
          %s172 = ssub.s32 128, 128
          %173 = vsyncadd [#allocation9], %s172
          %s175 = sshll.u32 [#allocation8], 4
          %s176 = int_to_ptr.vmem [resolvable:$true] %s175
          %178 = dma.hbm_to_vmem [thread:$0]  %s3, 128, %s176, [#allocation9]
        $region20: #{tpu_custom_call.1} parent=11 // pred_fallthru
          _
      $region12: #{tpu_custom_call.1} parent=5 // pred_fallthru
        _
      %p179 = scmp.lt.s32.totalorder %s20, 2
      // Predicated region
      $region21: #{tpu_custom_call.1} parent=5 // pred_check
        %p180 = pneg %p179
      $region22: #{tpu_custom_call.1} parent=5 // pred_check_branch
        %182 = sbr.rel (%p180) target = $region24
      $region23: #{tpu_custom_call.1} parent=5 // pred_region
        // Predicated region
        $region25: #{tpu_custom_call.1} parent=23 // pred_check
          %p183 = pneg %p40
        $region26: #{tpu_custom_call.1} parent=23 // pred_check_branch
          %185 = sbr.rel (%p183) target = $region28
        $region27: #{tpu_custom_call.1} parent=23 // pred_region
          %s186 = sand.u32 %s30, 1
          %s187 = scalar_lea.sflag [#allocation3], %s186
          %s188 = sand.u32 %s30, 1
          %s189 = smul.addr %s188, 208
          %s190 = scalar_lea.vmem [#allocation2], %s189
          %s191 = smul.u32 13, %s20
          %s193 = ssub.s32 3328, 3328
          %194 = vsyncadd %s187, %s193
          %s195 = smul.addr %s191, 2
          %s196 = smul.addr %s195, 128
          %s197 = scalar_lea.hbm %s0, %s196
          %s198 = sshll.u32 %s190, 4
          %s199 = int_to_ptr.vmem [resolvable:$true] %s198
          %204 = dma.hbm_to_vmem [thread:$0]  %s197, 3328, %s199, %s187, 256, 256, 16
        $region28: #{tpu_custom_call.1} parent=23 // pred_fallthru
          _
        // Predicated region
        $region29: #{tpu_custom_call.1} parent=23 // pred_check
          %p205 = pneg %p66
        $region30: #{tpu_custom_call.1} parent=23 // pred_check_branch
          %207 = sbr.rel (%p205) target = $region32
        $region31: #{tpu_custom_call.1} parent=23 // pred_region
          %s208 = sand.u32 %s20, 1
          %s209 = scalar_lea.sflag [#allocation6], %s208
          %s210 = sand.u32 %s56, 1
          %s211 = smul.addr %s210, 208
          %s212 = scalar_lea.vmem [#allocation5], %s211
          %s213 = smul.u32 13, %s20
          %s215 = ssub.s32 3328, 3328
          %216 = vsyncadd %s209, %s215
          %s217 = smul.addr %s213, 2
          %s218 = smul.addr %s217, 128
          %s219 = scalar_lea.hbm %s1, %s218
          %s220 = sshll.u32 %s212, 4
          %s221 = int_to_ptr.vmem [resolvable:$true] %s220
          %226 = dma.hbm_to_vmem [thread:$0]  %s219, 3328, %s221, %s209, 256, 256, 16
        $region32: #{tpu_custom_call.1} parent=23 // pred_fallthru
          _
      $region24: #{tpu_custom_call.1} parent=5 // pred_fallthru
        _
      %p227 = scmp.le.s32.totalorder 1, %s20
      %p228 = scmp.lt.s32.totalorder %s20, 3
      %p229 = pnand %p227, %p228
      %p230 = pneg %p229
      // Predicated region
      $region33: #{tpu_custom_call.1} parent=5 // pred_check
        _
      $region34: #{tpu_custom_call.1} parent=5 // pred_check_branch
        %232 = sbr.rel (%p229) target = $region36
      $region35: #{tpu_custom_call.1} parent=5 // pred_region
        %s233 = ssub.s32 %s20, 1
        %s234 = sand.u32 %s33, 1
        %s235 = scalar_lea.sflag [#allocation3], %s234
        %s236 = sand.u32 %s33, 1
        %s237 = smul.addr %s236, 208
        %s238 = scalar_lea.vmem [#allocation2], %s237
        // Predicated region
        $region37: #{tpu_custom_call.1} parent=35 // pred_check
          %p239 = pneg %p46
        $region38: #{tpu_custom_call.1} parent=35 // pred_check_branch
          %241 = sbr.rel (%p239) target = $region40
        $region39: #{tpu_custom_call.1} parent=35 // pred_region
          %242 = dma.done %s235, 3328
        $region40: #{tpu_custom_call.1} parent=35 // pred_fallthru
          _
        %s243 = sand.u32 %s25, 1
        %s244 = scalar_lea.sflag [#allocation6], %s243
        %s245 = sand.u32 %s59, 1
        %s246 = smul.addr %s245, 208
        %s247 = scalar_lea.vmem [#allocation5], %s246
        // Predicated region
        $region41: #{tpu_custom_call.1} parent=35 // pred_check
          %p248 = pneg %p72
        $region42: #{tpu_custom_call.1} parent=35 // pred_check_branch
          %250 = sbr.rel (%p248) target = $region44
        $region43: #{tpu_custom_call.1} parent=35 // pred_region
          %251 = dma.done %s244, 3328
        $region44: #{tpu_custom_call.1} parent=35 // pred_fallthru
          _
        // Predicated region
        $region45: #{tpu_custom_call.1} parent=35 // pred_check
          %p252 = pneg %p93
        $region46: #{tpu_custom_call.1} parent=35 // pred_check_branch
          %254 = sbr.rel (%p252) target = $region48
        $region47: #{tpu_custom_call.1} parent=35 // pred_region
          %255 = dma.done [#allocation6], 8192
        $region48: #{tpu_custom_call.1} parent=35 // pred_fallthru
          _
        // Predicated region
        $region49: #{tpu_custom_call.1} parent=35 // pred_check
          %p256 = pneg %p114
        $region50: #{tpu_custom_call.1} parent=35 // pred_check_branch
          %258 = sbr.rel (%p256) target = $region52
        $region51: #{tpu_custom_call.1} parent=35 // pred_region
          %259 = dma.done [#allocation9], 128
        $region52: #{tpu_custom_call.1} parent=35 // pred_fallthru
          _
        %s260 = sand.u32 %s33, 1
        %s261 = scalar_lea.sflag [#allocation3], %s260
        %s262 = sand.u32 %s33, 1
        %s263 = smul.addr %s262, 208
        %s264 = scalar_lea.vmem [#allocation2], %s263
        %p265 = pneg %p46
        %p266 = pneg %p43
        %s267 = sand.u32 %s25, 1
        %s268 = scalar_lea.sflag [#allocation6], %s267
        %s269 = sand.u32 %s59, 1
        %s270 = smul.addr %s269, 208
        %s271 = scalar_lea.vmem [#allocation5], %s270
        %p272 = pneg %p72
        %p273 = pneg %p69
        %p274 = pneg %p93
        %p275 = pneg %p90
        %p276 = pneg %p114
        %p277 = pneg %p111
        %p278 = pneg %p140
        %p279 = pneg %p137
        %s280 = sand.u32 %s127, 1
        %s281 = scalar_lea.sflag [#allocation4], %s280
        %s282 = sand.u32 %s127, 1
        %s283 = smul.addr %s282, 208
        %s284 = scalar_lea.vmem [#allocation10], %s283
        %s285 = smul.u32 13, %s25
        %s286 = smul.u32 13, %s25
        %s287 = smul.u32 13, %s25
        %v288 = vld [vmem:[%s238] sm:$0xff]
        %v289 = vld [vmem:[%s238 + $0x8] sm:$0xff]
        %v290 = vld [vmem:[%s238 + $0x10] sm:$0xff]
        %v291 = vld [vmem:[%s238 + $0x18] sm:$0xff]
        %v292 = vld [vmem:[%s238 + $0x20] sm:$0xff]
        %v293 = vld [vmem:[%s238 + $0x28] sm:$0xff]
        %v294 = vld [vmem:[%s238 + $0x30] sm:$0xff]
        %v295 = vld [vmem:[%s238 + $0x38] sm:$0xff]
        %v296 = vld [vmem:[%s238 + $0x40] sm:$0xff]
        %v297 = vld [vmem:[%s238 + $0x48] sm:$0xff]
        %v298 = vld [vmem:[%s238 + $0x50] sm:$0xff]
        %v299 = vld [vmem:[%s238 + $0x58] sm:$0xff]
        %v300 = vld [vmem:[%s238 + $0x60] sm:$0xff]
        %v301 = vld [vmem:[%s238 + $0x68] sm:$0xff]
        %v302 = vld [vmem:[%s238 + $0x70] sm:$0xff]
        %v303 = vld [vmem:[%s238 + $0x78] sm:$0xff]
        %v304 = vld [vmem:[%s238 + $0x80] sm:$0xff]
        %v305 = vld [vmem:[%s238 + $0x88] sm:$0xff]
        %v306 = vld [vmem:[%s238 + $0x90] sm:$0xff]
        %v307 = vld [vmem:[%s238 + $0x98] sm:$0xff]
        %v308 = vld [vmem:[%s238 + $0xa0] sm:$0xff]
        %v309 = vld [vmem:[%s238 + $0xa8] sm:$0xff]
        %v310 = vld [vmem:[%s238 + $0xb0] sm:$0xff]
        %v311 = vld [vmem:[%s238 + $0xb8] sm:$0xff]
        %v312 = vld [vmem:[%s238 + $0xc0] sm:$0xff]
        %v313 = vld [vmem:[%s238 + $0xc8] sm:$0xff]
        %v314 = vld [vmem:[#allocation7] sm:$0xff]
        %v315 = vld [vmem:[#allocation7 + $0x8] sm:$0xff]
        %v316 = vld [vmem:[#allocation7 + $0x10] sm:$0xff]
        %v317 = vld [vmem:[#allocation7 + $0x18] sm:$0xff]
        %v318 = vld [vmem:[#allocation7 + $0x20] sm:$0xff]
        %v319 = vld [vmem:[#allocation7 + $0x28] sm:$0xff]
        %v320 = vld [vmem:[#allocation7 + $0x30] sm:$0xff]
        %v321 = vld [vmem:[#allocation7 + $0x38] sm:$0xff]
        %v322 = vld [vmem:[#allocation7 + $0x40] sm:$0xff]
        %v323 = vld [vmem:[#allocation7 + $0x48] sm:$0xff]
        %v324 = vld [vmem:[#allocation7 + $0x50] sm:$0xff]
        %v325 = vld [vmem:[#allocation7 + $0x58] sm:$0xff]
        %v326 = vld [vmem:[#allocation7 + $0x60] sm:$0xff]
        %v327 = vld [vmem:[#allocation7 + $0x68] sm:$0xff]
        %v328 = vld [vmem:[#allocation7 + $0x70] sm:$0xff]
        %v329 = vld [vmem:[#allocation7 + $0x78] sm:$0xff]
        %v330 = vld [vmem:[#allocation7 + $0x80] sm:$0xff]
        %v331 = vld [vmem:[#allocation7 + $0x88] sm:$0xff]
        %v332 = vld [vmem:[#allocation7 + $0x90] sm:$0xff]
        %v333 = vld [vmem:[#allocation7 + $0x98] sm:$0xff]
        %v334 = vld [vmem:[#allocation7 + $0xa0] sm:$0xff]
        %v335 = vld [vmem:[#allocation7 + $0xa8] sm:$0xff]
        %v336 = vld [vmem:[#allocation7 + $0xb0] sm:$0xff]
        %v337 = vld [vmem:[#allocation7 + $0xb8] sm:$0xff]
        %v338 = vld [vmem:[#allocation7 + $0xc0] sm:$0xff]
        %v339 = vld [vmem:[#allocation7 + $0xc8] sm:$0xff]
        %v340 = vld [vmem:[#allocation7 + $0xd0] sm:$0xff]
        %v341 = vld [vmem:[#allocation7 + $0xd8] sm:$0xff]
        %v342 = vld [vmem:[#allocation7 + $0xe0] sm:$0xff]
        %v343 = vld [vmem:[#allocation7 + $0xe8] sm:$0xff]
        %v344 = vld [vmem:[#allocation7 + $0xf0] sm:$0xff]
        %v345 = vld [vmem:[#allocation7 + $0xf8] sm:$0xff]
        %v346 = vld [vmem:[#allocation7 + $0x100] sm:$0xff]
        %v347 = vld [vmem:[#allocation7 + $0x108] sm:$0xff]
        %v348 = vld [vmem:[#allocation7 + $0x110] sm:$0xff]
        %v349 = vld [vmem:[#allocation7 + $0x118] sm:$0xff]
        %v350 = vld [vmem:[#allocation7 + $0x120] sm:$0xff]
        %v351 = vld [vmem:[#allocation7 + $0x128] sm:$0xff]
        %v352 = vld [vmem:[#allocation7 + $0x130] sm:$0xff]
        %v353 = vld [vmem:[#allocation7 + $0x138] sm:$0xff]
        %v354 = vld [vmem:[#allocation7 + $0x140] sm:$0xff]
        %v355 = vld [vmem:[#allocation7 + $0x148] sm:$0xff]
        %v356 = vld [vmem:[#allocation7 + $0x150] sm:$0xff]
        %v357 = vld [vmem:[#allocation7 + $0x158] sm:$0xff]
        %v358 = vld [vmem:[#allocation7 + $0x160] sm:$0xff]
        %v359 = vld [vmem:[#allocation7 + $0x168] sm:$0xff]
        %v360 = vld [vmem:[#allocation7 + $0x170] sm:$0xff]
        %v361 = vld [vmem:[#allocation7 + $0x178] sm:$0xff]
        %v362 = vld [vmem:[#allocation7 + $0x180] sm:$0xff]
        %v363 = vld [vmem:[#allocation7 + $0x188] sm:$0xff]
        %v364 = vld [vmem:[#allocation7 + $0x190] sm:$0xff]
        %v365 = vld [vmem:[#allocation7 + $0x198] sm:$0xff]
        %v366 = vld [vmem:[#allocation7 + $0x1a0] sm:$0xff]
        %v367 = vld [vmem:[#allocation7 + $0x1a8] sm:$0xff]
        %v368 = vld [vmem:[#allocation7 + $0x1b0] sm:$0xff]
        %v369 = vld [vmem:[#allocation7 + $0x1b8] sm:$0xff]
        %v370 = vld [vmem:[#allocation7 + $0x1c0] sm:$0xff]
        %v371 = vld [vmem:[#allocation7 + $0x1c8] sm:$0xff]
        %v372 = vld [vmem:[#allocation7 + $0x1d0] sm:$0xff]
        %v373 = vld [vmem:[#allocation7 + $0x1d8] sm:$0xff]
        %v374 = vld [vmem:[#allocation7 + $0x1e0] sm:$0xff]
        %v375 = vld [vmem:[#allocation7 + $0x1e8] sm:$0xff]
        %v376 = vld [vmem:[#allocation7 + $0x1f0] sm:$0xff]
        %v377 = vld [vmem:[#allocation7 + $0x1f8] sm:$0xff]
        %v378 = vld [vmem:[#allocation8] sm:$0x77]
        %v380 = vlaneseq
        %v381 = vshrl.u32 %v380, 7
        %v382 = vsub.s32 0, %v381
        %v383 = vrot.slane %v378, %v382
        %v384 = vlaneseq
        %v385 = vshrl.u32 %v384, 7
        %v386 = vsub.s32 4, %v385
        %v387 = vrot.slane %v378, %v386
        %v390 = vlaneseq
        %v391 = vshrl.u32 %v390, 7
        %v392 = vsub.s32 0, %v391
        %v393 = vrot.slane %v383, %v392
        %v394 = vlaneseq
        %v395 = vshrl.u32 %v394, 7
        %v396 = vsub.s32 0, %v395
        %v397 = vrot.slane %v387, %v396
        %398 = vmatprep.subr.mxu0 %v345
        %399 = vmatpush1.msra.mxu0 %v344
        %400 = vmatprep.subr.mxu0 %v343
        %401 = vmatpush1.msra.mxu0 %v342
        %402 = vmatprep.subr.mxu0 %v341
        %403 = vmatpush1.msra.mxu0 %v340
        %404 = vmatprep.subr.mxu0 %v339
        %405 = vmatpush1.msra.mxu0 %v338
        %406 = vmatprep.subr.mxu0 %v337
        %407 = vmatpush1.msra.mxu0 %v336
        %408 = vmatprep.subr.mxu0 %v335
        %409 = vmatpush1.msra.mxu0 %v334
        %410 = vmatprep.subr.mxu0 %v333
        %411 = vmatpush1.msra.mxu0 %v332
        %412 = vmatprep.subr.mxu0 %v331
        %413 = vmatpush1.msra.mxu0 %v330
        %414 = vmatprep.subr.mxu0 %v329
        %415 = vmatpush1.msra.mxu0 %v328
        %416 = vmatprep.subr.mxu0 %v327
        %417 = vmatpush1.msra.mxu0 %v326
        %418 = vmatprep.subr.mxu0 %v325
        %419 = vmatpush1.msra.mxu0 %v324
        %420 = vmatprep.subr.mxu0 %v323
        %421 = vmatpush1.msra.mxu0 %v322
        %422 = vmatprep.subr.mxu0 %v321
        %423 = vmatpush1.msra.mxu0 %v320
        %424 = vmatprep.subr.mxu0 %v319
        %425 = vmatpush1.msra.mxu0 %v318
        %426 = vmatprep.subr.mxu0 %v317
        %427 = vmatpush1.msra.mxu0 %v316
        %428 = vmatprep.subr.mxu0 %v315
        %429 = vmatpush1.msra.mxu0 %v314
        %430 = vmatprep.subr.mxu0 %v377
        %431 = vmatpush2.msra.mxu0 %v376
        %432 = vmatprep.subr.mxu0 %v375
        %433 = vmatpush2.msra.mxu0 %v374
        %434 = vmatprep.subr.mxu0 %v373
        %435 = vmatpush2.msra.mxu0 %v372
        %436 = vmatprep.subr.mxu0 %v371
        %437 = vmatpush2.msra.mxu0 %v370
        %438 = vmatprep.subr.mxu0 %v369
        %439 = vmatpush2.msra.mxu0 %v368
        %440 = vmatprep.subr.mxu0 %v367
        %441 = vmatpush2.msra.mxu0 %v366
        %442 = vmatprep.subr.mxu0 %v365
        %443 = vmatpush2.msra.mxu0 %v364
        %444 = vmatprep.subr.mxu0 %v363
        %445 = vmatpush2.msra.mxu0 %v362
        %446 = vmatprep.subr.mxu0 %v361
        %447 = vmatpush2.msra.mxu0 %v360
        %448 = vmatprep.subr.mxu0 %v359
        %449 = vmatpush2.msra.mxu0 %v358
        %450 = vmatprep.subr.mxu0 %v357
        %451 = vmatpush2.msra.mxu0 %v356
        %452 = vmatprep.subr.mxu0 %v355
        %453 = vmatpush2.msra.mxu0 %v354
        %454 = vmatprep.subr.mxu0 %v353
        %455 = vmatpush2.msra.mxu0 %v352
        %456 = vmatprep.subr.mxu0 %v351
        %457 = vmatpush2.msra.mxu0 %v350
        %458 = vmatprep.subr.mxu0 %v349
        %459 = vmatpush2.msra.mxu0 %v348
        %460 = vmatprep.subr.mxu0 %v347
        %461 = vmatpush2.msra.mxu0 %v346
        %462 = vmatprep.mubr.f32.mxu0 %v289
        %463 = vmatmul.mubr.f32.gmra.mxu0 %v288
        %v464 = vpop.f32.mrf.mxu0
        %v465 = vadd.f32 %v393, %v464
        %v466 = vpop.f32.mrf.mxu0
        %v467 = vadd.f32 %v397, %v466
        %468 = vmatprep.mubr.f32.mxu0 %v291
        %469 = vmatmul.mubr.f32.gmra.mxu0 %v290
        %v470 = vpop.f32.mrf.mxu0
        %v471 = vadd.f32 %v393, %v470
        %v472 = vpop.f32.mrf.mxu0
        %v473 = vadd.f32 %v397, %v472
        %474 = vmatprep.mubr.f32.mxu0 %v293
        %475 = vmatmul.mubr.f32.gmra.mxu0 %v292
        %v476 = vpop.f32.mrf.mxu0
        %v477 = vadd.f32 %v393, %v476
        %v478 = vpop.f32.mrf.mxu0
        %v479 = vadd.f32 %v397, %v478
        %480 = vmatprep.mubr.f32.mxu0 %v295
        %481 = vmatmul.mubr.f32.gmra.mxu0 %v294
        %v482 = vpop.f32.mrf.mxu0
        %v483 = vadd.f32 %v393, %v482
        %v484 = vpop.f32.mrf.mxu0
        %v485 = vadd.f32 %v397, %v484
        %486 = vmatprep.mubr.f32.mxu0 %v297
        %487 = vmatmul.mubr.f32.gmra.mxu0 %v296
        %v488 = vpop.f32.mrf.mxu0
        %v489 = vadd.f32 %v393, %v488
        %v490 = vpop.f32.mrf.mxu0
        %v491 = vadd.f32 %v397, %v490
        %492 = vmatprep.mubr.f32.mxu0 %v299
        %493 = vmatmul.mubr.f32.gmra.mxu0 %v298
        %v494 = vpop.f32.mrf.mxu0
        %v495 = vadd.f32 %v393, %v494
        %v496 = vpop.f32.mrf.mxu0
        %v497 = vadd.f32 %v397, %v496
        %498 = vmatprep.mubr.f32.mxu0 %v301
        %499 = vmatmul.mubr.f32.gmra.mxu0 %v300
        %v500 = vpop.f32.mrf.mxu0
        %v501 = vadd.f32 %v393, %v500
        %v502 = vpop.f32.mrf.mxu0
        %v503 = vadd.f32 %v397, %v502
        %504 = vmatprep.mubr.f32.mxu0 %v303
        %505 = vmatmul.mubr.f32.gmra.mxu0 %v302
        %v506 = vpop.f32.mrf.mxu0
        %v507 = vadd.f32 %v393, %v506
        %v508 = vpop.f32.mrf.mxu0
        %v509 = vadd.f32 %v397, %v508
        %510 = vmatprep.mubr.f32.mxu0 %v305
        %511 = vmatmul.mubr.f32.gmra.mxu0 %v304
        %v512 = vpop.f32.mrf.mxu0
        %v513 = vadd.f32 %v393, %v512
        %v514 = vpop.f32.mrf.mxu0
        %v515 = vadd.f32 %v397, %v514
        %516 = vmatprep.mubr.f32.mxu0 %v307
        %517 = vmatmul.mubr.f32.gmra.mxu0 %v306
        %v518 = vpop.f32.mrf.mxu0
        %v519 = vadd.f32 %v393, %v518
        %v520 = vpop.f32.mrf.mxu0
        %v521 = vadd.f32 %v397, %v520
        %522 = vmatprep.mubr.f32.mxu0 %v309
        %523 = vmatmul.mubr.f32.gmra.mxu0 %v308
        %v524 = vpop.f32.mrf.mxu0
        %v525 = vadd.f32 %v393, %v524
        %v526 = vpop.f32.mrf.mxu0
        %v527 = vadd.f32 %v397, %v526
        %528 = vmatprep.mubr.f32.mxu0 %v311
        %529 = vmatmul.mubr.f32.gmra.mxu0 %v310
        %v530 = vpop.f32.mrf.mxu0
        %v531 = vadd.f32 %v393, %v530
        %v532 = vpop.f32.mrf.mxu0
        %v533 = vadd.f32 %v397, %v532
        %534 = vmatprep.mubr.f32.mxu0 %v313
        %535 = vmatmul.mubr.f32.gmra.mxu0 %v312
        %v536 = vpop.f32.mrf.mxu0
        %v537 = vadd.f32 %v393, %v536
        %v538 = vpop.f32.mrf.mxu0
        %v539 = vadd.f32 %v397, %v538
        %540 = vdwg.mxu0
        %v541 = vld [vmem:[%s247] sm:$0xff]
        %v542 = vld [vmem:[%s247 + $0x8] sm:$0xff]
        %v543 = vld [vmem:[%s247 + $0x10] sm:$0xff]
        %v544 = vld [vmem:[%s247 + $0x18] sm:$0xff]
        %v545 = vld [vmem:[%s247 + $0x20] sm:$0xff]
        %v546 = vld [vmem:[%s247 + $0x28] sm:$0xff]
        %v547 = vld [vmem:[%s247 + $0x30] sm:$0xff]
        %v548 = vld [vmem:[%s247 + $0x38] sm:$0xff]
        %v549 = vld [vmem:[%s247 + $0x40] sm:$0xff]
        %v550 = vld [vmem:[%s247 + $0x48] sm:$0xff]
        %v551 = vld [vmem:[%s247 + $0x50] sm:$0xff]
        %v552 = vld [vmem:[%s247 + $0x58] sm:$0xff]
        %v553 = vld [vmem:[%s247 + $0x60] sm:$0xff]
        %v554 = vld [vmem:[%s247 + $0x68] sm:$0xff]
        %v555 = vld [vmem:[%s247 + $0x70] sm:$0xff]
        %v556 = vld [vmem:[%s247 + $0x78] sm:$0xff]
        %v557 = vld [vmem:[%s247 + $0x80] sm:$0xff]
        %v558 = vld [vmem:[%s247 + $0x88] sm:$0xff]
        %v559 = vld [vmem:[%s247 + $0x90] sm:$0xff]
        %v560 = vld [vmem:[%s247 + $0x98] sm:$0xff]
        %v561 = vld [vmem:[%s247 + $0xa0] sm:$0xff]
        %v562 = vld [vmem:[%s247 + $0xa8] sm:$0xff]
        %v563 = vld [vmem:[%s247 + $0xb0] sm:$0xff]
        %v564 = vld [vmem:[%s247 + $0xb8] sm:$0xff]
        %v565 = vld [vmem:[%s247 + $0xc0] sm:$0xff]
        %v566 = vld [vmem:[%s247 + $0xc8] sm:$0xff]
        %v567 = vadd.f32 %v465, %v541
        %v568 = vadd.f32 %v467, %v542
        %v569 = vadd.f32 %v471, %v543
        %v570 = vadd.f32 %v473, %v544
        %v571 = vadd.f32 %v477, %v545
        %v572 = vadd.f32 %v479, %v546
        %v573 = vadd.f32 %v483, %v547
        %v574 = vadd.f32 %v485, %v548
        %v575 = vadd.f32 %v489, %v549
        %v576 = vadd.f32 %v491, %v550
        %v577 = vadd.f32 %v495, %v551
        %v578 = vadd.f32 %v497, %v552
        %v579 = vadd.f32 %v501, %v553
        %v580 = vadd.f32 %v503, %v554
        %v581 = vadd.f32 %v507, %v555
        %v582 = vadd.f32 %v509, %v556
        %v583 = vadd.f32 %v513, %v557
        %v584 = vadd.f32 %v515, %v558
        %v585 = vadd.f32 %v519, %v559
        %v586 = vadd.f32 %v521, %v560
        %v587 = vadd.f32 %v525, %v561
        %v588 = vadd.f32 %v527, %v562
        %v589 = vadd.f32 %v531, %v563
        %v590 = vadd.f32 %v533, %v564
        %v591 = vadd.f32 %v537, %v565
        %v592 = vadd.f32 %v539, %v566
        %v593 = vadd.f32 %v567, %v568
        %594 = vadd.xlane.f32.xlu0 %v593
        %v595 = vpop.xlane.xlu0 %594
        %v596 = vadd.f32 %v569, %v570
        %597 = vadd.xlane.f32.xlu0 %v596
        %v598 = vpop.xlane.xlu0 %597
        %v599 = vadd.f32 %v571, %v572
        %600 = vadd.xlane.f32.xlu0 %v599
        %v601 = vpop.xlane.xlu0 %600
        %v602 = vadd.f32 %v573, %v574
        %603 = vadd.xlane.f32.xlu0 %v602
        %v604 = vpop.xlane.xlu0 %603
        %v605 = vadd.f32 %v575, %v576
        %606 = vadd.xlane.f32.xlu0 %v605
        %v607 = vpop.xlane.xlu0 %606
        %v608 = vadd.f32 %v577, %v578
        %609 = vadd.xlane.f32.xlu0 %v608
        %v610 = vpop.xlane.xlu0 %609
        %v611 = vadd.f32 %v579, %v580
        %612 = vadd.xlane.f32.xlu0 %v611
        %v613 = vpop.xlane.xlu0 %612
        %v614 = vadd.f32 %v581, %v582
        %615 = vadd.xlane.f32.xlu0 %v614
        %v616 = vpop.xlane.xlu0 %615
        %v617 = vadd.f32 %v583, %v584
        %618 = vadd.xlane.f32.xlu0 %v617
        %v619 = vpop.xlane.xlu0 %618
        %v620 = vadd.f32 %v585, %v586
        %621 = vadd.xlane.f32.xlu0 %v620
        %v622 = vpop.xlane.xlu0 %621
        %v623 = vadd.f32 %v587, %v588
        %624 = vadd.xlane.f32.xlu0 %v623
        %v625 = vpop.xlane.xlu0 %624
        %v626 = vadd.f32 %v589, %v590
        %627 = vadd.xlane.f32.xlu0 %v626
        %v628 = vpop.xlane.xlu0 %627
        %v629 = vadd.f32 %v591, %v592
        %630 = vadd.xlane.f32.xlu0 %v629
        %v631 = vpop.xlane.xlu0 %630
        %v632 = vrcp.pop 256.0
        %v633 = vmul.f32 %v595, %v632
        %v634 = vmul.f32 %v598, %v632
        %v635 = vmul.f32 %v601, %v632
        %v636 = vmul.f32 %v604, %v632
        %v637 = vmul.f32 %v607, %v632
        %v638 = vmul.f32 %v610, %v632
        %v639 = vmul.f32 %v613, %v632
        %v640 = vmul.f32 %v616, %v632
        %v641 = vmul.f32 %v619, %v632
        %v642 = vmul.f32 %v622, %v632
        %v643 = vmul.f32 %v625, %v632
        %v644 = vmul.f32 %v628, %v632
        %v645 = vmul.f32 %v631, %v632
        %v646 = vmul.f32 %v567, %v567
        %v647 = vmul.f32 %v568, %v568
        %v648 = vmul.f32 %v569, %v569
        %v649 = vmul.f32 %v570, %v570
        %v650 = vmul.f32 %v571, %v571
        %v651 = vmul.f32 %v572, %v572
        %v652 = vmul.f32 %v573, %v573
        %v653 = vmul.f32 %v574, %v574
        %v654 = vmul.f32 %v575, %v575
        %v655 = vmul.f32 %v576, %v576
        %v656 = vmul.f32 %v577, %v577
        %v657 = vmul.f32 %v578, %v578
        %v658 = vmul.f32 %v579, %v579
        %v659 = vmul.f32 %v580, %v580
        %v660 = vmul.f32 %v581, %v581
        %v661 = vmul.f32 %v582, %v582
        %v662 = vmul.f32 %v583, %v583
        %v663 = vmul.f32 %v584, %v584
        %v664 = vmul.f32 %v585, %v585
        %v665 = vmul.f32 %v586, %v586
        %v666 = vmul.f32 %v587, %v587
        %v667 = vmul.f32 %v588, %v588
        %v668 = vmul.f32 %v589, %v589
        %v669 = vmul.f32 %v590, %v590
        %v670 = vmul.f32 %v591, %v591
        %v671 = vmul.f32 %v592, %v592
        %v672 = vadd.f32 %v646, %v647
        %673 = vadd.xlane.f32.xlu0 %v672
        %v674 = vpop.xlane.xlu0 %673
        %v675 = vadd.f32 %v648, %v649
        %676 = vadd.xlane.f32.xlu0 %v675
        %v677 = vpop.xlane.xlu0 %676
        %v678 = vadd.f32 %v650, %v651
        %679 = vadd.xlane.f32.xlu0 %v678
        %v680 = vpop.xlane.xlu0 %679
        %v681 = vadd.f32 %v652, %v653
        %682 = vadd.xlane.f32.xlu0 %v681
        %v683 = vpop.xlane.xlu0 %682
        %v684 = vadd.f32 %v654, %v655
        %685 = vadd.xlane.f32.xlu0 %v684
        %v686 = vpop.xlane.xlu0 %685
        %v687 = vadd.f32 %v656, %v657
        %688 = vadd.xlane.f32.xlu0 %v687
        %v689 = vpop.xlane.xlu0 %688
        %v690 = vadd.f32 %v658, %v659
        %691 = vadd.xlane.f32.xlu0 %v690
        %v692 = vpop.xlane.xlu0 %691
        %v693 = vadd.f32 %v660, %v661
        %694 = vadd.xlane.f32.xlu0 %v693
        %v695 = vpop.xlane.xlu0 %694
        %v696 = vadd.f32 %v662, %v663
        %697 = vadd.xlane.f32.xlu0 %v696
        %v698 = vpop.xlane.xlu0 %697
        %v699 = vadd.f32 %v664, %v665
        %700 = vadd.xlane.f32.xlu0 %v699
        %v701 = vpop.xlane.xlu0 %700
        %v702 = vadd.f32 %v666, %v667
        %703 = vadd.xlane.f32.xlu0 %v702
        %v704 = vpop.xlane.xlu0 %703
        %v705 = vadd.f32 %v668, %v669
        %706 = vadd.xlane.f32.xlu0 %v705
        %v707 = vpop.xlane.xlu0 %706
        %v708 = vadd.f32 %v670, %v671
        %709 = vadd.xlane.f32.xlu0 %v708
        %v710 = vpop.xlane.xlu0 %709
        %v711 = vmul.f32 %v674, %v632
        %v712 = vmul.f32 %v677, %v632
        %v713 = vmul.f32 %v680, %v632
        %v714 = vmul.f32 %v683, %v632
        %v715 = vmul.f32 %v686, %v632
        %v716 = vmul.f32 %v689, %v632
        %v717 = vmul.f32 %v692, %v632
        %v718 = vmul.f32 %v695, %v632
        %v719 = vmul.f32 %v698, %v632
        %v720 = vmul.f32 %v701, %v632
        %v721 = vmul.f32 %v704, %v632
        %v722 = vmul.f32 %v707, %v632
        %v723 = vmul.f32 %v710, %v632
        %v724 = vmul.f32 %v633, %v633
        %v725 = vmul.f32 %v634, %v634
        %v726 = vmul.f32 %v635, %v635
        %v727 = vmul.f32 %v636, %v636
        %v728 = vmul.f32 %v637, %v637
        %v729 = vmul.f32 %v638, %v638
        %v730 = vmul.f32 %v639, %v639
        %v731 = vmul.f32 %v640, %v640
        %v732 = vmul.f32 %v641, %v641
        %v733 = vmul.f32 %v642, %v642
        %v734 = vmul.f32 %v643, %v643
        %v735 = vmul.f32 %v644, %v644
        %v736 = vmul.f32 %v645, %v645
        %v737 = vsub.f32 %v711, %v724
        %v738 = vsub.f32 %v712, %v725
        %v739 = vsub.f32 %v713, %v726
        %v740 = vsub.f32 %v714, %v727
        %v741 = vsub.f32 %v715, %v728
        %v742 = vsub.f32 %v716, %v729
        %v743 = vsub.f32 %v717, %v730
        %v744 = vsub.f32 %v718, %v731
        %v745 = vsub.f32 %v719, %v732
        %v746 = vsub.f32 %v720, %v733
        %v747 = vsub.f32 %v721, %v734
        %v748 = vsub.f32 %v722, %v735
        %v749 = vsub.f32 %v723, %v736
        %v750 = vmax.f32 %v737, 0.0
        %v751 = vmax.f32 %v738, 0.0
        %v752 = vmax.f32 %v739, 0.0
        %v753 = vmax.f32 %v740, 0.0
        %v754 = vmax.f32 %v741, 0.0
        %v755 = vmax.f32 %v742, 0.0
        %v756 = vmax.f32 %v743, 0.0
        %v757 = vmax.f32 %v744, 0.0
        %v758 = vmax.f32 %v745, 0.0
        %v759 = vmax.f32 %v746, 0.0
        %v760 = vmax.f32 %v747, 0.0
        %v761 = vmax.f32 %v748, 0.0
        %v762 = vmax.f32 %v749, 0.0
        %v763 = vadd.f32 %v750, 1e-05
        %v764 = vadd.f32 %v751, 1e-05
        %v765 = vadd.f32 %v752, 1e-05
        %v766 = vadd.f32 %v753, 1e-05
        %v767 = vadd.f32 %v754, 1e-05
        %v768 = vadd.f32 %v755, 1e-05
        %v769 = vadd.f32 %v756, 1e-05
        %v770 = vadd.f32 %v757, 1e-05
        %v771 = vadd.f32 %v758, 1e-05
        %v772 = vadd.f32 %v759, 1e-05
        %v773 = vadd.f32 %v760, 1e-05
        %v774 = vadd.f32 %v761, 1e-05
        %v775 = vadd.f32 %v762, 1e-05
        %v776 = vrsqrt.pop %v763
        %v777 = vrsqrt.pop %v764
        %v778 = vrsqrt.pop %v765
        %v779 = vrsqrt.pop %v766
        %v780 = vrsqrt.pop %v767
        %v781 = vrsqrt.pop %v768
        %v782 = vrsqrt.pop %v769
        %v783 = vrsqrt.pop %v770
        %v784 = vrsqrt.pop %v771
        %v785 = vrsqrt.pop %v772
        %v786 = vrsqrt.pop %v773
        %v787 = vrsqrt.pop %v774
        %v788 = vrsqrt.pop %v775
        %v789 = vsub.f32 %v567, %v633
        %v790 = vsub.f32 %v568, %v633
        %v791 = vsub.f32 %v569, %v634
        %v792 = vsub.f32 %v570, %v634
        %v793 = vsub.f32 %v571, %v635
        %v794 = vsub.f32 %v572, %v635
        %v795 = vsub.f32 %v573, %v636
        %v796 = vsub.f32 %v574, %v636
        %v797 = vsub.f32 %v575, %v637
        %v798 = vsub.f32 %v576, %v637
        %v799 = vsub.f32 %v577, %v638
        %v800 = vsub.f32 %v578, %v638
        %v801 = vsub.f32 %v579, %v639
        %v802 = vsub.f32 %v580, %v639
        %v803 = vsub.f32 %v581, %v640
        %v804 = vsub.f32 %v582, %v640
        %v805 = vsub.f32 %v583, %v641
        %v806 = vsub.f32 %v584, %v641
        %v807 = vsub.f32 %v585, %v642
        %v808 = vsub.f32 %v586, %v642
        %v809 = vsub.f32 %v587, %v643
        %v810 = vsub.f32 %v588, %v643
        %v811 = vsub.f32 %v589, %v644
        %v812 = vsub.f32 %v590, %v644
        %v813 = vsub.f32 %v591, %v645
        %v814 = vsub.f32 %v592, %v645
        %v815 = vmul.f32 %v789, %v776
        %v816 = vmul.f32 %v790, %v776
        %v817 = vmul.f32 %v791, %v777
        %v818 = vmul.f32 %v792, %v777
        %v819 = vmul.f32 %v793, %v778
        %v820 = vmul.f32 %v794, %v778
        %v821 = vmul.f32 %v795, %v779
        %v822 = vmul.f32 %v796, %v779
        %v823 = vmul.f32 %v797, %v780
        %v824 = vmul.f32 %v798, %v780
        %v825 = vmul.f32 %v799, %v781
        %v826 = vmul.f32 %v800, %v781
        %v827 = vmul.f32 %v801, %v782
        %v828 = vmul.f32 %v802, %v782
        %v829 = vmul.f32 %v803, %v783
        %v830 = vmul.f32 %v804, %v783
        %v831 = vmul.f32 %v805, %v784
        %v832 = vmul.f32 %v806, %v784
        %v833 = vmul.f32 %v807, %v785
        %v834 = vmul.f32 %v808, %v785
        %v835 = vmul.f32 %v809, %v786
        %v836 = vmul.f32 %v810, %v786
        %v837 = vmul.f32 %v811, %v787
        %v838 = vmul.f32 %v812, %v787
        %v839 = vmul.f32 %v813, %v788
        %v840 = vmul.f32 %v814, %v788
        %v841 = vlaneseq
        %v842 = vshrl.u32 %v841, 7
        %v843 = vsub.s32 1, %v842
        %v844 = vrot.slane %v378, %v843
        %v845 = vlaneseq
        %v846 = vshrl.u32 %v845, 7
        %v847 = vsub.s32 5, %v846
        %v848 = vrot.slane %v378, %v847
        %v851 = vlaneseq
        %v852 = vshrl.u32 %v851, 7
        %v853 = vsub.s32 1, %v852
        %v854 = vrot.slane %v844, %v853
        %v855 = vlaneseq
        %v856 = vshrl.u32 %v855, 7
        %v857 = vsub.s32 1, %v856
        %v858 = vrot.slane %v848, %v857
        %v859 = vmul.f32 %v815, %v854
        %v860 = vmul.f32 %v816, %v858
        %v861 = vmul.f32 %v817, %v854
        %v862 = vmul.f32 %v818, %v858
        %v863 = vmul.f32 %v819, %v854
        %v864 = vmul.f32 %v820, %v858
        %v865 = vmul.f32 %v821, %v854
        %v866 = vmul.f32 %v822, %v858
        %v867 = vmul.f32 %v823, %v854
        %v868 = vmul.f32 %v824, %v858
        %v869 = vmul.f32 %v825, %v854
        %v870 = vmul.f32 %v826, %v858
        %v871 = vmul.f32 %v827, %v854
        %v872 = vmul.f32 %v828, %v858
        %v873 = vmul.f32 %v829, %v854
        %v874 = vmul.f32 %v830, %v858
        %v875 = vmul.f32 %v831, %v854
        %v876 = vmul.f32 %v832, %v858
        %v877 = vmul.f32 %v833, %v854
        %v878 = vmul.f32 %v834, %v858
        %v879 = vmul.f32 %v835, %v854
        %v880 = vmul.f32 %v836, %v858
        %v881 = vmul.f32 %v837, %v854
        %v882 = vmul.f32 %v838, %v858
        %v883 = vmul.f32 %v839, %v854
        %v884 = vmul.f32 %v840, %v858
        %v885 = vlaneseq
        %v886 = vshrl.u32 %v885, 7
        %v887 = vsub.s32 2, %v886
        %v888 = vrot.slane %v378, %v887
        %v889 = vlaneseq
        %v890 = vshrl.u32 %v889, 7
        %v891 = vsub.s32 6, %v890
        %v892 = vrot.slane %v378, %v891
        %v895 = vlaneseq
        %v896 = vshrl.u32 %v895, 7
        %v897 = vsub.s32 2, %v896
        %v898 = vrot.slane %v888, %v897
        %v899 = vlaneseq
        %v900 = vshrl.u32 %v899, 7
        %v901 = vsub.s32 2, %v900
        %v902 = vrot.slane %v892, %v901
        %v903 = vadd.f32 %v859, %v898
        %v904 = vadd.f32 %v860, %v902
        %v905 = vadd.f32 %v861, %v898
        %v906 = vadd.f32 %v862, %v902
        %v907 = vadd.f32 %v863, %v898
        %v908 = vadd.f32 %v864, %v902
        %v909 = vadd.f32 %v865, %v898
        %v910 = vadd.f32 %v866, %v902
        %v911 = vadd.f32 %v867, %v898
        %v912 = vadd.f32 %v868, %v902
        %v913 = vadd.f32 %v869, %v898
        %v914 = vadd.f32 %v870, %v902
        %v915 = vadd.f32 %v871, %v898
        %v916 = vadd.f32 %v872, %v902
        %v917 = vadd.f32 %v873, %v898
        %v918 = vadd.f32 %v874, %v902
        %v919 = vadd.f32 %v875, %v898
        %v920 = vadd.f32 %v876, %v902
        %v921 = vadd.f32 %v877, %v898
        %v922 = vadd.f32 %v878, %v902
        %v923 = vadd.f32 %v879, %v898
        %v924 = vadd.f32 %v880, %v902
        %v925 = vadd.f32 %v881, %v898
        %v926 = vadd.f32 %v882, %v902
        %v927 = vadd.f32 %v883, %v898
        %v928 = vadd.f32 %v884, %v902
        %929 = vst [vmem:[%s284] sm:$0xff] %v903
        %930 = vst [vmem:[%s284 + $0x8] sm:$0xff] %v904
        %931 = vst [vmem:[%s284 + $0x10] sm:$0xff] %v905
        %932 = vst [vmem:[%s284 + $0x18] sm:$0xff] %v906
        %933 = vst [vmem:[%s284 + $0x20] sm:$0xff] %v907
        %934 = vst [vmem:[%s284 + $0x28] sm:$0xff] %v908
        %935 = vst [vmem:[%s284 + $0x30] sm:$0xff] %v909
        %936 = vst [vmem:[%s284 + $0x38] sm:$0xff] %v910
        %937 = vst [vmem:[%s284 + $0x40] sm:$0xff] %v911
        %938 = vst [vmem:[%s284 + $0x48] sm:$0xff] %v912
        %939 = vst [vmem:[%s284 + $0x50] sm:$0xff] %v913
        %940 = vst [vmem:[%s284 + $0x58] sm:$0xff] %v914
        %941 = vst [vmem:[%s284 + $0x60] sm:$0xff] %v915
        %942 = vst [vmem:[%s284 + $0x68] sm:$0xff] %v916
        %943 = vst [vmem:[%s284 + $0x70] sm:$0xff] %v917
        %944 = vst [vmem:[%s284 + $0x78] sm:$0xff] %v918
        %945 = vst [vmem:[%s284 + $0x80] sm:$0xff] %v919
        %946 = vst [vmem:[%s284 + $0x88] sm:$0xff] %v920
        %947 = vst [vmem:[%s284 + $0x90] sm:$0xff] %v921
        %948 = vst [vmem:[%s284 + $0x98] sm:$0xff] %v922
        %949 = vst [vmem:[%s284 + $0xa0] sm:$0xff] %v923
        %950 = vst [vmem:[%s284 + $0xa8] sm:$0xff] %v924
        %951 = vst [vmem:[%s284 + $0xb0] sm:$0xff] %v925
        %952 = vst [vmem:[%s284 + $0xb8] sm:$0xff] %v926
        %953 = vst [vmem:[%s284 + $0xc0] sm:$0xff] %v927
        %954 = vst [vmem:[%s284 + $0xc8] sm:$0xff] %v928
        %s955 = sand.u32 %s127, 1
        %s956 = scalar_lea.sflag [#allocation4], %s955
        %s957 = sand.u32 %s127, 1
        %s958 = smul.addr %s957, 208
        %s959 = scalar_lea.vmem [#allocation10], %s958
        // Predicated region
        $region53: #{tpu_custom_call.1} parent=35 // pred_check
          %p960 = pneg %p137
        $region54: #{tpu_custom_call.1} parent=35 // pred_check_branch
          %962 = sbr.rel (%p960) target = $region56
        $region55: #{tpu_custom_call.1} parent=35 // pred_region
          %s963 = smul.u32 13, %s25
          %s965 = ssub.s32 3328, 3328
          %966 = vsyncadd %s956, %s965
          %s967 = smul.addr %s963, 2
          %s968 = smul.addr %s967, 128
          %s969 = scalar_lea.hbm %s4, %s968
          %s970 = sshll.u32 %s959, 4
          %s971 = int_to_ptr.vmem [resolvable:$true] %s970
          %976 = dma.vmem_to_hbm [thread:$0]  %s971, 3328, %s969, %s956, 256, 256, 16
        $region56: #{tpu_custom_call.1} parent=35 // pred_fallthru
          _
      $region36: #{tpu_custom_call.1} parent=5 // pred_fallthru
        _
      %p977 = scmp.le.s32.totalorder 2, %s20
      // Predicated region
      $region57: #{tpu_custom_call.1} parent=5 // pred_check
        %p978 = pneg %p977
      $region58: #{tpu_custom_call.1} parent=5 // pred_check_branch
        %980 = sbr.rel (%p978) target = $region60
      $region59: #{tpu_custom_call.1} parent=5 // pred_region
        %s981 = ssub.s32 %s20, 2
        // Predicated region
        $region61: #{tpu_custom_call.1} parent=59 // pred_check
          %p982 = pneg %p143
        $region62: #{tpu_custom_call.1} parent=59 // pred_check_branch
          %984 = sbr.rel (%p982) target = $region64
        $region63: #{tpu_custom_call.1} parent=59 // pred_region
          %s985 = sand.u32 %s128, 1
          %s986 = scalar_lea.sflag [#allocation4], %s985
          %s987 = sand.u32 %s128, 1
          %s988 = smul.addr %s987, 208
          %s989 = scalar_lea.vmem [#allocation10], %s988
          %990 = dma.done %s986, 3328
        $region64: #{tpu_custom_call.1} parent=59 // pred_fallthru
          _
      $region60: #{tpu_custom_call.1} parent=5 // pred_fallthru
        _
    $region6: #{tpu_custom_call.1} parent=1 // loop_footer
      %s24 = sadd.s32 1, %s20
    $region7: #{tpu_custom_call.1} parent=1 // loop_footer_branch
      %19 = sbr.rel target = $region3
    $region8: #{tpu_custom_call.1} parent=1 // loop_exit
      _
    %991 = vsyncpa [#allocation3], 1
    %s992 = scalar_lea.sflag [#allocation3], 1
    %993 = vsyncpa %s992, 1
    %994 = vsyncpa [#allocation6], 1
    %s995 = scalar_lea.sflag [#allocation6], 1
    %996 = vsyncpa %s995, 1
    %997 = vsyncpa [#allocation9], 1
    %998 = vsyncpa [#allocation4], 1
    %s999 = scalar_lea.sflag [#allocation4], 1
    %1000 = vsyncpa %s999, 1

// kernel: tpu_custom_call.1
$region0: #{tpu_custom_call.1}
  #allocation0 [shape = 'u32[]', space=smem, size = 0x4, offset = 0x4, fixed_abs, tag = 'smem constant byte address 0x4 - core index']
  #allocation1 [shape = 'u32[144,128]{1,0:T(1,128)}', space=vmem, size = 0x12000, scoped, tag = 'internal scratch']
  %s0 = inlined_call_operand.hbm [shape: f32[208,256], index: 0, kind: input, shape index: {}]
  %s1 = inlined_call_operand.hbm [shape: f32[208,256], index: 1, kind: input, shape index: {}]
  %s2 = inlined_call_operand.hbm [shape: f32[256,256], index: 2, kind: input, shape index: {}]
  %s3 = inlined_call_operand.hbm [shape: f32[3,256], index: 3, kind: input, shape index: {}]
  %s4 = inlined_call_operand.hbm [shape: f32[208,256], index: 4, kind: output, shape index: {}]
  %s5 = sld [smem:[#allocation0]]
  $region65: #{tpu_custom_call.1} parent=0
    _
  %s7 = ssub.s32 1, %s5
  %s8 = scalar_select 0, %s7, %s5
  $region1: #{tpu_custom_call.1} parent=0
    #allocation2 [shape = 'u8[212992]{0}', space=vmem, size = 0x34000, scoped, tag = 'input window, operand 0']
    #allocation3 [shape = 's32[2]{0}', space=sflag, size = 0x8, scoped, tag = 'scoped memory for tpu_custom_call.1']
    #allocation4 [shape = 's32[2]{0}', space=sflag, size = 0x8, scoped, tag = 'scoped memory for tpu_custom_call.1']
    #allocation5 [shape = 'u8[212992]{0}', space=vmem, size = 0x34000, scoped, tag = 'input window, operand 1']
    #allocation6 [shape = 's32[2]{0}', space=sflag, size = 0x8, scoped, tag = 'scoped memory for tpu_custom_call.1']
    #allocation7 [shape = 'u8[262144]{0}', space=vmem, size = 0x40000, scoped, tag = 'input window, operand 2, single buffered']
    #allocation8 [shape = 'u8[4096]{0}', space=vmem, size = 0x1000, scoped, tag = 'input window, operand 3, single buffered']
    #allocation9 [shape = 's32[1]{0}', space=sflag, size = 0x4, scoped, tag = 'scoped memory for tpu_custom_call.1']
    #allocation10 [shape = 'u8[212992]{0}', space=vmem, size = 0x34000, scoped, tag = 'output window, operand 0']
    %9 = vsyncpa [#allocation3], 0
    %s10 = scalar_lea.sflag [#allocation3], 1
    %11 = vsyncpa %s10, 0
    %12 = vsyncpa [#allocation6], 0
    %s13 = scalar_lea.sflag [#allocation6], 1
    %14 = vsyncpa %s13, 0
    %15 = vsyncpa [#allocation9], 0
    %16 = vsyncpa [#allocation4], 0
    %s17 = scalar_lea.sflag [#allocation4], 1
    %18 = vsyncpa %s17, 0
    loop: start=0, step=1, limit=4
    $region2: #{tpu_custom_call.1} parent=1 // loop_pre_header
      _
    $region3: #{tpu_custom_call.1} parent=1 // loop_header
      %s20 = sphi 0, %s24
      %p21 = scmp.ge.s32.totalorder %s20, 4
      %s30 = sphi 0, %s32
      %s33 = sphi 0, %s30
      %s34 = sphi 0, %s33
      %s50 = sphi 0, %s34
      %s56 = sphi 0, %s58
      %s59 = sphi 0, %s56
      %s60 = sphi 0, %s59
      %s76 = sphi 0, %s60
      %s80 = sphi 0, %s80
      %s82 = sphi 0, %s80
      %s83 = sphi 0, %s82
      %s97 = sphi 0, %s83
      %s101 = sphi 0, %s101
      %s103 = sphi 0, %s101
      %s104 = sphi 0, %s103
      %s118 = sphi 0, %s104
      %s124 = sphi 0, %s126
      %s127 = sphi 0, %s124
      %s128 = sphi 0, %s127
      %s144 = sphi 0, %s128
    $region4: #{tpu_custom_call.1} parent=1 // loop_header_branch
      %23 = sbr.rel (%p21) target = $region8
    $region5: #{tpu_custom_call.1} parent=1 // loop_body
      %s25 = ssub.s32 %s20, 1
      %s26 = ssub.s32 %s20, 2
      %s27 = sadd.s32 %s20, 1
      %s28 = ssub.s32 %s20, %s27
      %p29 = scmp.eq.s32.totalorder %s28, 0
      %s31 = sadd.s32 %s30, 1
      %s32 = scalar_select %p29, %s30, %s31
      %p35 = pneg %p29
      %p36 = scmp.eq.s32.totalorder %s20, 1
      %p37 = por %p35, %p36
      %p38 = scmp.ne.s32.totalorder %s30, %s33
      %p39 = scmp.eq.s32.totalorder %s20, 0
      %p40 = por %p38, %p39
      %p41 = scmp.ne.s32.totalorder %s30, %s33
      %p42 = scmp.eq.s32.totalorder %s25, 1
      %p43 = por %p41, %p42
      %p44 = scmp.ne.s32.totalorder %s33, %s34
      %p45 = scmp.eq.s32.totalorder %s25, 0
      %p46 = por %p44, %p45
      %p47 = scmp.ne.s32.totalorder %s33, %s34
      %p48 = scmp.eq.s32.totalorder %s26, 1
      %p49 = por %p47, %p48
      %p51 = scmp.ne.s32.totalorder %s34, %s50
      %p52 = scmp.eq.s32.totalorder %s26, 0
      %p53 = por %p51, %p52
      %s54 = ssub.s32 %s20, %s27
      %p55 = scmp.eq.s32.totalorder %s54, 0
      %s57 = sadd.s32 %s56, 1
      %s58 = scalar_select %p55, %s56, %s57
      %p61 = pneg %p55
      %p62 = scmp.eq.s32.totalorder %s20, 1
      %p63 = por %p61, %p62
      %p64 = scmp.ne.s32.totalorder %s56, %s59
      %p65 = scmp.eq.s32.totalorder %s20, 0
      %p66 = por %p64, %p65
      %p67 = scmp.ne.s32.totalorder %s56, %s59
      %p68 = scmp.eq.s32.totalorder %s25, 1
      %p69 = por %p67, %p68
      %p70 = scmp.ne.s32.totalorder %s59, %s60
      %p71 = scmp.eq.s32.totalorder %s25, 0
      %p72 = por %p70, %p71
      %p73 = scmp.ne.s32.totalorder %s59, %s60
      %p74 = scmp.eq.s32.totalorder %s26, 1
      %p75 = por %p73, %p74
      %p77 = scmp.ne.s32.totalorder %s60, %s76
      %p78 = scmp.eq.s32.totalorder %s26, 0
      %p79 = por %p77, %p78
      %s81 = sadd.s32 %s80, 1
      %p84 = scmp.eq.s32.totalorder %s20, 1
      %p85 = scmp.ne.s32.totalorder %s80, %s82
      %p86 = scmp.eq.s32.totalorder %s20, 0
      %p87 = por %p85, %p86
      %p88 = scmp.ne.s32.totalorder %s80, %s82
      %p89 = scmp.eq.s32.totalorder %s25, 1
      %p90 = por %p88, %p89
      %p91 = scmp.ne.s32.totalorder %s82, %s83
      %p92 = scmp.eq.s32.totalorder %s25, 0
      %p93 = por %p91, %p92
      %p94 = scmp.ne.s32.totalorder %s82, %s83
      %p95 = scmp.eq.s32.totalorder %s26, 1
      %p96 = por %p94, %p95
      %p98 = scmp.ne.s32.totalorder %s83, %s97
      %p99 = scmp.eq.s32.totalorder %s26, 0
      %p100 = por %p98, %p99
      %s102 = sadd.s32 %s101, 1
      %p105 = scmp.eq.s32.totalorder %s20, 1
      %p106 = scmp.ne.s32.totalorder %s101, %s103
      %p107 = scmp.eq.s32.totalorder %s20, 0
      %p108 = por %p106, %p107
      %p109 = scmp.ne.s32.totalorder %s101, %s103
      %p110 = scmp.eq.s32.totalorder %s25, 1
      %p111 = por %p109, %p110
      %p112 = scmp.ne.s32.totalorder %s103, %s104
      %p113 = scmp.eq.s32.totalorder %s25, 0
      %p114 = por %p112, %p113
      %p115 = scmp.ne.s32.totalorder %s103, %s104
      %p116 = scmp.eq.s32.totalorder %s26, 1
      %p117 = por %p115, %p116
      %p119 = scmp.ne.s32.totalorder %s104, %s118
      %p120 = scmp.eq.s32.totalorder %s26, 0
      %p121 = por %p119, %p120
      %s122 = ssub.s32 %s20, %s27
      %p123 = scmp.eq.s32.totalorder %s122, 0
      %s125 = sadd.s32 %s124, 1
      %s126 = scalar_select %p123, %s124, %s125
      %p129 = pneg %p123
      %p130 = scmp.eq.s32.totalorder %s20, 1
      %p131 = por %p129, %p130
      %p132 = scmp.ne.s32.totalorder %s124, %s127
      %p133 = scmp.eq.s32.totalorder %s20, 0
      %p134 = por %p132, %p133
      %p135 = scmp.ne.s32.totalorder %s124, %s127
      %p136 = scmp.eq.s32.totalorder %s25, 1
      %p137 = por %p135, %p136
      %p138 = scmp.ne.s32.totalorder %s127, %s128
      %p139 = scmp.eq.s32.totalorder %s25, 0
      %p140 = por %p138, %p139
      %p141 = scmp.ne.s32.totalorder %s127, %s128
      %p142 = scmp.eq.s32.totalorder %s26, 1
      %p143 = por %p141, %p142
      %p145 = scmp.ne.s32.totalorder %s128, %s144
      %p146 = scmp.eq.s32.totalorder %s26, 0
      %p147 = por %p145, %p146
      %p148 = scmp.le.s32.totalorder 1, %s20
      %p149 = scmp.lt.s32.totalorder %s20, 3
      %p150 = pnand %p148, %p149
      %p151 = pneg %p150
      // Predicated region
      $region9: #{tpu_custom_call.1} parent=5 // pred_check
        _
      $region10: #{tpu_custom_call.1} parent=5 // pred_check_branch
        %153 = sbr.rel (%p150) target = $region12
      $region11: #{tpu_custom_call.1} parent=5 // pred_region
        %s154 = ssub.s32 %s20, 1
        // Predicated region
        $region13: #{tpu_custom_call.1} parent=11 // pred_check
          %p155 = pneg %p93
        $region14: #{tpu_custom_call.1} parent=11 // pred_check_branch
          %157 = sbr.rel (%p155) target = $region16
        $region15: #{tpu_custom_call.1} parent=11 // pred_region
          %s159 = ssub.s32 8192, 8192
          %160 = vsyncadd [#allocation6], %s159
          %s161 = sshll.u32 [#allocation7], 4
          %s162 = int_to_ptr.vmem [resolvable:$true] %s161
          %167 = dma.hbm_to_vmem [thread:$0]  %s2, 8192, %s162, [#allocation6], 256, 256, 16
        $region16: #{tpu_custom_call.1} parent=11 // pred_fallthru
          _
        // Predicated region
        $region17: #{tpu_custom_call.1} parent=11 // pred_check
          %p168 = pneg %p114
        $region18: #{tpu_custom_call.1} parent=11 // pred_check_branch
          %170 = sbr.rel (%p168) target = $region20
        $region19: #{tpu_custom_call.1} parent=11 // pred_region
          %s172 = ssub.s32 128, 128
          %173 = vsyncadd [#allocation9], %s172
          %s175 = sshll.u32 [#allocation8], 4
          %s176 = int_to_ptr.vmem [resolvable:$true] %s175
          %178 = dma.hbm_to_vmem [thread:$0]  %s3, 128, %s176, [#allocation9]
        $region20: #{tpu_custom_call.1} parent=11 // pred_fallthru
          _
      $region12: #{tpu_custom_call.1} parent=5 // pred_fallthru
        _
      %p179 = scmp.lt.s32.totalorder %s20, 2
      // Predicated region
      $region21: #{tpu_custom_call.1} parent=5 // pred_check
        %p180 = pneg %p179
      $region22: #{tpu_custom_call.1} parent=5 // pred_check_branch
        %182 = sbr.rel (%p180) target = $region24
      $region23: #{tpu_custom_call.1} parent=5 // pred_region
        // Predicated region
        $region25: #{tpu_custom_call.1} parent=23 // pred_check
          %p183 = pneg %p40
        $region26: #{tpu_custom_call.1} parent=23 // pred_check_branch
          %185 = sbr.rel (%p183) target = $region28
        $region27: #{tpu_custom_call.1} parent=23 // pred_region
          %s186 = sand.u32 %s30, 1
          %s187 = scalar_lea.sflag [#allocation3], %s186
          %s188 = sand.u32 %s30, 1
          %s189 = smul.addr %s188, 208
          %s190 = scalar_lea.vmem [#allocation2], %s189
          %s191 = smul.u32 13, %s20
          %s193 = ssub.s32 3328, 3328
          %194 = vsyncadd %s187, %s193
          %s195 = smul.addr %s191, 2
          %s196 = smul.addr %s195, 128
          %s197 = scalar_lea.hbm %s0, %s196
          %s198 = sshll.u32 %s190, 4
          %s199 = int_to_ptr.vmem [resolvable:$true] %s198
          %204 = dma.hbm_to_vmem [thread:$0]  %s197, 3328, %s199, %s187, 256, 256, 16
        $region28: #{tpu_custom_call.1} parent=23 // pred_fallthru
          _
        // Predicated region
        $region29: #{tpu_custom_call.1} parent=23 // pred_check
          %p205 = pneg %p66
        $region30: #{tpu_custom_call.1} parent=23 // pred_check_branch
          %207 = sbr.rel (%p205) target = $region32
        $region31: #{tpu_custom_call.1} parent=23 // pred_region
          %s208 = sand.u32 %s20, 1
          %s209 = scalar_lea.sflag [#allocation6], %s208
          %s210 = sand.u32 %s56, 1
          %s211 = smul.addr %s210, 208
          %s212 = scalar_lea.vmem [#allocation5], %s211
          %s213 = smul.u32 13, %s20
          %s215 = ssub.s32 3328, 3328
          %216 = vsyncadd %s209, %s215
          %s217 = smul.addr %s213, 2
          %s218 = smul.addr %s217, 128
          %s219 = scalar_lea.hbm %s1, %s218
          %s220 = sshll.u32 %s212, 4
          %s221 = int_to_ptr.vmem [resolvable:$true] %s220
          %226 = dma.hbm_to_vmem [thread:$0]  %s219, 3328, %s221, %s209, 256, 256, 16
        $region32: #{tpu_custom_call.1} parent=23 // pred_fallthru
          _
      $region24: #{tpu_custom_call.1} parent=5 // pred_fallthru
        _
      %p227 = scmp.le.s32.totalorder 1, %s20
      %p228 = scmp.lt.s32.totalorder %s20, 3
      %p229 = pnand %p227, %p228
      %p230 = pneg %p229
      // Predicated region
      $region33: #{tpu_custom_call.1} parent=5 // pred_check
        _
      $region34: #{tpu_custom_call.1} parent=5 // pred_check_branch
        %232 = sbr.rel (%p229) target = $region36
      $region35: #{tpu_custom_call.1} parent=5 // pred_region
        %s233 = ssub.s32 %s20, 1
        %s234 = sand.u32 %s33, 1
        %s235 = scalar_lea.sflag [#allocation3], %s234
        %s236 = sand.u32 %s33, 1
        %s237 = smul.addr %s236, 208
        %s238 = scalar_lea.vmem [#allocation2], %s237
        // Predicated region
        $region37: #{tpu_custom_call.1} parent=35 // pred_check
          %p239 = pneg %p46
        $region38: #{tpu_custom_call.1} parent=35 // pred_check_branch
          %241 = sbr.rel (%p239) target = $region40
        $region39: #{tpu_custom_call.1} parent=35 // pred_region
          %242 = dma.done %s235, 3328
        $region40: #{tpu_custom_call.1} parent=35 // pred_fallthru
          _
        %s243 = sand.u32 %s25, 1
        %s244 = scalar_lea.sflag [#allocation6], %s243
        %s245 = sand.u32 %s59, 1
        %s246 = smul.addr %s245, 208
        %s247 = scalar_lea.vmem [#allocation5], %s246
        // Predicated region
        $region41: #{tpu_custom_call.1} parent=35 // pred_check
          %p248 = pneg %p72
        $region42: #{tpu_custom_call.1} parent=35 // pred_check_branch
          %250 = sbr.rel (%p248) target = $region44
        $region43: #{tpu_custom_call.1} parent=35 // pred_region
          %251 = dma.done %s244, 3328
        $region44: #{tpu_custom_call.1} parent=35 // pred_fallthru
          _
        // Predicated region
        $region45: #{tpu_custom_call.1} parent=35 // pred_check
          %p252 = pneg %p93
        $region46: #{tpu_custom_call.1} parent=35 // pred_check_branch
          %254 = sbr.rel (%p252) target = $region48
        $region47: #{tpu_custom_call.1} parent=35 // pred_region
          %255 = dma.done [#allocation6], 8192
        $region48: #{tpu_custom_call.1} parent=35 // pred_fallthru
          _
        // Predicated region
        $region49: #{tpu_custom_call.1} parent=35 // pred_check
          %p256 = pneg %p114
        $region50: #{tpu_custom_call.1} parent=35 // pred_check_branch
          %258 = sbr.rel (%p256) target = $region52
        $region51: #{tpu_custom_call.1} parent=35 // pred_region
          %259 = dma.done [#allocation9], 128
        $region52: #{tpu_custom_call.1} parent=35 // pred_fallthru
          _
        %s260 = sand.u32 %s33, 1
        %s261 = scalar_lea.sflag [#allocation3], %s260
        %s262 = sand.u32 %s33, 1
        %s263 = smul.addr %s262, 208
        %s264 = scalar_lea.vmem [#allocation2], %s263
        %p265 = pneg %p46
        %p266 = pneg %p43
        %s267 = sand.u32 %s25, 1
        %s268 = scalar_lea.sflag [#allocation6], %s267
        %s269 = sand.u32 %s59, 1
        %s270 = smul.addr %s269, 208
        %s271 = scalar_lea.vmem [#allocation5], %s270
        %p272 = pneg %p72
        %p273 = pneg %p69
        %p274 = pneg %p93
        %p275 = pneg %p90
        %p276 = pneg %p114
        %p277 = pneg %p111
        %p278 = pneg %p140
        %p279 = pneg %p137
        %s280 = sand.u32 %s127, 1
        %s281 = scalar_lea.sflag [#allocation4], %s280
        %s282 = sand.u32 %s127, 1
        %s283 = smul.addr %s282, 208
        %s284 = scalar_lea.vmem [#allocation10], %s283
        %s285 = smul.u32 13, %s25
        %s286 = smul.u32 13, %s25
        %s287 = smul.u32 13, %s25
        %v288 = vld [vmem:[%s238] sm:$0xff]
        %v289 = vld [vmem:[%s238 + $0x8] sm:$0xff]
        %v290 = vld [vmem:[%s238 + $0x10] sm:$0xff]
        %v291 = vld [vmem:[%s238 + $0x18] sm:$0xff]
        %v292 = vld [vmem:[%s238 + $0x20] sm:$0xff]
        %v293 = vld [vmem:[%s238 + $0x28] sm:$0xff]
        %v294 = vld [vmem:[%s238 + $0x30] sm:$0xff]
        %v295 = vld [vmem:[%s238 + $0x38] sm:$0xff]
        %v296 = vld [vmem:[%s238 + $0x40] sm:$0xff]
        %v297 = vld [vmem:[%s238 + $0x48] sm:$0xff]
        %v298 = vld [vmem:[%s238 + $0x50] sm:$0xff]
        %v299 = vld [vmem:[%s238 + $0x58] sm:$0xff]
        %v300 = vld [vmem:[%s238 + $0x60] sm:$0xff]
        %v301 = vld [vmem:[%s238 + $0x68] sm:$0xff]
        %v302 = vld [vmem:[%s238 + $0x70] sm:$0xff]
        %v303 = vld [vmem:[%s238 + $0x78] sm:$0xff]
        %v304 = vld [vmem:[%s238 + $0x80] sm:$0xff]
        %v305 = vld [vmem:[%s238 + $0x88] sm:$0xff]
        %v306 = vld [vmem:[%s238 + $0x90] sm:$0xff]
        %v307 = vld [vmem:[%s238 + $0x98] sm:$0xff]
        %v308 = vld [vmem:[%s238 + $0xa0] sm:$0xff]
        %v309 = vld [vmem:[%s238 + $0xa8] sm:$0xff]
        %v310 = vld [vmem:[%s238 + $0xb0] sm:$0xff]
        %v311 = vld [vmem:[%s238 + $0xb8] sm:$0xff]
        %v312 = vld [vmem:[%s238 + $0xc0] sm:$0xff]
        %v313 = vld [vmem:[%s238 + $0xc8] sm:$0xff]
        %v314 = vld [vmem:[#allocation7] sm:$0xff]
        %v315 = vld [vmem:[#allocation7 + $0x8] sm:$0xff]
        %v316 = vld [vmem:[#allocation7 + $0x10] sm:$0xff]
        %v317 = vld [vmem:[#allocation7 + $0x18] sm:$0xff]
        %v318 = vld [vmem:[#allocation7 + $0x20] sm:$0xff]
        %v319 = vld [vmem:[#allocation7 + $0x28] sm:$0xff]
        %v320 = vld [vmem:[#allocation7 + $0x30] sm:$0xff]
        %v321 = vld [vmem:[#allocation7 + $0x38] sm:$0xff]
        %v322 = vld [vmem:[#allocation7 + $0x40] sm:$0xff]
        %v323 = vld [vmem:[#allocation7 + $0x48] sm:$0xff]
        %v324 = vld [vmem:[#allocation7 + $0x50] sm:$0xff]
        %v325 = vld [vmem:[#allocation7 + $0x58] sm:$0xff]
        %v326 = vld [vmem:[#allocation7 + $0x60] sm:$0xff]
        %v327 = vld [vmem:[#allocation7 + $0x68] sm:$0xff]
        %v328 = vld [vmem:[#allocation7 + $0x70] sm:$0xff]
        %v329 = vld [vmem:[#allocation7 + $0x78] sm:$0xff]
        %v330 = vld [vmem:[#allocation7 + $0x80] sm:$0xff]
        %v331 = vld [vmem:[#allocation7 + $0x88] sm:$0xff]
        %v332 = vld [vmem:[#allocation7 + $0x90] sm:$0xff]
        %v333 = vld [vmem:[#allocation7 + $0x98] sm:$0xff]
        %v334 = vld [vmem:[#allocation7 + $0xa0] sm:$0xff]
        %v335 = vld [vmem:[#allocation7 + $0xa8] sm:$0xff]
        %v336 = vld [vmem:[#allocation7 + $0xb0] sm:$0xff]
        %v337 = vld [vmem:[#allocation7 + $0xb8] sm:$0xff]
        %v338 = vld [vmem:[#allocation7 + $0xc0] sm:$0xff]
        %v339 = vld [vmem:[#allocation7 + $0xc8] sm:$0xff]
        %v340 = vld [vmem:[#allocation7 + $0xd0] sm:$0xff]
        %v341 = vld [vmem:[#allocation7 + $0xd8] sm:$0xff]
        %v342 = vld [vmem:[#allocation7 + $0xe0] sm:$0xff]
        %v343 = vld [vmem:[#allocation7 + $0xe8] sm:$0xff]
        %v344 = vld [vmem:[#allocation7 + $0xf0] sm:$0xff]
        %v345 = vld [vmem:[#allocation7 + $0xf8] sm:$0xff]
        %v346 = vld [vmem:[#allocation7 + $0x100] sm:$0xff]
        %v347 = vld [vmem:[#allocation7 + $0x108] sm:$0xff]
        %v348 = vld [vmem:[#allocation7 + $0x110] sm:$0xff]
        %v349 = vld [vmem:[#allocation7 + $0x118] sm:$0xff]
        %v350 = vld [vmem:[#allocation7 + $0x120] sm:$0xff]
        %v351 = vld [vmem:[#allocation7 + $0x128] sm:$0xff]
        %v352 = vld [vmem:[#allocation7 + $0x130] sm:$0xff]
        %v353 = vld [vmem:[#allocation7 + $0x138] sm:$0xff]
        %v354 = vld [vmem:[#allocation7 + $0x140] sm:$0xff]
        %v355 = vld [vmem:[#allocation7 + $0x148] sm:$0xff]
        %v356 = vld [vmem:[#allocation7 + $0x150] sm:$0xff]
        %v357 = vld [vmem:[#allocation7 + $0x158] sm:$0xff]
        %v358 = vld [vmem:[#allocation7 + $0x160] sm:$0xff]
        %v359 = vld [vmem:[#allocation7 + $0x168] sm:$0xff]
        %v360 = vld [vmem:[#allocation7 + $0x170] sm:$0xff]
        %v361 = vld [vmem:[#allocation7 + $0x178] sm:$0xff]
        %v362 = vld [vmem:[#allocation7 + $0x180] sm:$0xff]
        %v363 = vld [vmem:[#allocation7 + $0x188] sm:$0xff]
        %v364 = vld [vmem:[#allocation7 + $0x190] sm:$0xff]
        %v365 = vld [vmem:[#allocation7 + $0x198] sm:$0xff]
        %v366 = vld [vmem:[#allocation7 + $0x1a0] sm:$0xff]
        %v367 = vld [vmem:[#allocation7 + $0x1a8] sm:$0xff]
        %v368 = vld [vmem:[#allocation7 + $0x1b0] sm:$0xff]
        %v369 = vld [vmem:[#allocation7 + $0x1b8] sm:$0xff]
        %v370 = vld [vmem:[#allocation7 + $0x1c0] sm:$0xff]
        %v371 = vld [vmem:[#allocation7 + $0x1c8] sm:$0xff]
        %v372 = vld [vmem:[#allocation7 + $0x1d0] sm:$0xff]
        %v373 = vld [vmem:[#allocation7 + $0x1d8] sm:$0xff]
        %v374 = vld [vmem:[#allocation7 + $0x1e0] sm:$0xff]
        %v375 = vld [vmem:[#allocation7 + $0x1e8] sm:$0xff]
        %v376 = vld [vmem:[#allocation7 + $0x1f0] sm:$0xff]
        %v377 = vld [vmem:[#allocation7 + $0x1f8] sm:$0xff]
        %v378 = vld [vmem:[#allocation8] sm:$0x77]
        %v380 = vlaneseq
        %v381 = vshrl.u32 %v380, 7
        %v382 = vsub.s32 0, %v381
        %v383 = vrot.slane %v378, %v382
        %v384 = vlaneseq
        %v385 = vshrl.u32 %v384, 7
        %v386 = vsub.s32 4, %v385
        %v387 = vrot.slane %v378, %v386
        %v390 = vlaneseq
        %v391 = vshrl.u32 %v390, 7
        %v392 = vsub.s32 0, %v391
        %v393 = vrot.slane %v383, %v392
        %v394 = vlaneseq
        %v395 = vshrl.u32 %v394, 7
        %v396 = vsub.s32 0, %v395
        %v397 = vrot.slane %v387, %v396
        %398 = vmatprep.subr.mxu0 %v345
        %399 = vmatpush1.msra.mxu0 %v344
        %400 = vmatprep.subr.mxu0 %v343
        %401 = vmatpush1.msra.mxu0 %v342
        %402 = vmatprep.subr.mxu0 %v341
        %403 = vmatpush1.msra.mxu0 %v340
        %404 = vmatprep.subr.mxu0 %v339
        %405 = vmatpush1.msra.mxu0 %v338
        %406 = vmatprep.subr.mxu0 %v337
        %407 = vmatpush1.msra.mxu0 %v336
        %408 = vmatprep.subr.mxu0 %v335
        %409 = vmatpush1.msra.mxu0 %v334
        %410 = vmatprep.subr.mxu0 %v333
        %411 = vmatpush1.msra.mxu0 %v332
        %412 = vmatprep.subr.mxu0 %v331
        %413 = vmatpush1.msra.mxu0 %v330
        %414 = vmatprep.subr.mxu0 %v329
        %415 = vmatpush1.msra.mxu0 %v328
        %416 = vmatprep.subr.mxu0 %v327
        %417 = vmatpush1.msra.mxu0 %v326
        %418 = vmatprep.subr.mxu0 %v325
        %419 = vmatpush1.msra.mxu0 %v324
        %420 = vmatprep.subr.mxu0 %v323
        %421 = vmatpush1.msra.mxu0 %v322
        %422 = vmatprep.subr.mxu0 %v321
        %423 = vmatpush1.msra.mxu0 %v320
        %424 = vmatprep.subr.mxu0 %v319
        %425 = vmatpush1.msra.mxu0 %v318
        %426 = vmatprep.subr.mxu0 %v317
        %427 = vmatpush1.msra.mxu0 %v316
        %428 = vmatprep.subr.mxu0 %v315
        %429 = vmatpush1.msra.mxu0 %v314
        %430 = vmatprep.subr.mxu0 %v377
        %431 = vmatpush2.msra.mxu0 %v376
        %432 = vmatprep.subr.mxu0 %v375
        %433 = vmatpush2.msra.mxu0 %v374
        %434 = vmatprep.subr.mxu0 %v373
        %435 = vmatpush2.msra.mxu0 %v372
        %436 = vmatprep.subr.mxu0 %v371
        %437 = vmatpush2.msra.mxu0 %v370
        %438 = vmatprep.subr.mxu0 %v369
        %439 = vmatpush2.msra.mxu0 %v368
        %440 = vmatprep.subr.mxu0 %v367
        %441 = vmatpush2.msra.mxu0 %v366
        %442 = vmatprep.subr.mxu0 %v365
        %443 = vmatpush2.msra.mxu0 %v364
        %444 = vmatprep.subr.mxu0 %v363
        %445 = vmatpush2.msra.mxu0 %v362
        %446 = vmatprep.subr.mxu0 %v361
        %447 = vmatpush2.msra.mxu0 %v360
        %448 = vmatprep.subr.mxu0 %v359
        %449 = vmatpush2.msra.mxu0 %v358
        %450 = vmatprep.subr.mxu0 %v357
        %451 = vmatpush2.msra.mxu0 %v356
        %452 = vmatprep.subr.mxu0 %v355
        %453 = vmatpush2.msra.mxu0 %v354
        %454 = vmatprep.subr.mxu0 %v353
        %455 = vmatpush2.msra.mxu0 %v352
        %456 = vmatprep.subr.mxu0 %v351
        %457 = vmatpush2.msra.mxu0 %v350
        %458 = vmatprep.subr.mxu0 %v349
        %459 = vmatpush2.msra.mxu0 %v348
        %460 = vmatprep.subr.mxu0 %v347
        %461 = vmatpush2.msra.mxu0 %v346
        %462 = vmatprep.mubr.f32.mxu0 %v289
        %463 = vmatmul.mubr.f32.gmra.mxu0 %v288
        %v464 = vpop.f32.mrf.mxu0
        %v465 = vadd.f32 %v393, %v464
        %v466 = vpop.f32.mrf.mxu0
        %v467 = vadd.f32 %v397, %v466
        %468 = vmatprep.mubr.f32.mxu0 %v291
        %469 = vmatmul.mubr.f32.gmra.mxu0 %v290
        %v470 = vpop.f32.mrf.mxu0
        %v471 = vadd.f32 %v393, %v470
        %v472 = vpop.f32.mrf.mxu0
        %v473 = vadd.f32 %v397, %v472
        %474 = vmatprep.mubr.f32.mxu0 %v293
        %475 = vmatmul.mubr.f32.gmra.mxu0 %v292
        %v476 = vpop.f32.mrf.mxu0
        %v477 = vadd.f32 %v393, %v476
        %v478 = vpop.f32.mrf.mxu0
        %v479 = vadd.f32 %v397, %v478
        %480 = vmatprep.mubr.f32.mxu0 %v295
        %481 = vmatmul.mubr.f32.gmra.mxu0 %v294
        %v482 = vpop.f32.mrf.mxu0
        %v483 = vadd.f32 %v393, %v482
        %v484 = vpop.f32.mrf.mxu0
        %v485 = vadd.f32 %v397, %v484
        %486 = vmatprep.mubr.f32.mxu0 %v297
        %487 = vmatmul.mubr.f32.gmra.mxu0 %v296
        %v488 = vpop.f32.mrf.mxu0
        %v489 = vadd.f32 %v393, %v488
        %v490 = vpop.f32.mrf.mxu0
        %v491 = vadd.f32 %v397, %v490
        %492 = vmatprep.mubr.f32.mxu0 %v299
        %493 = vmatmul.mubr.f32.gmra.mxu0 %v298
        %v494 = vpop.f32.mrf.mxu0
        %v495 = vadd.f32 %v393, %v494
        %v496 = vpop.f32.mrf.mxu0
        %v497 = vadd.f32 %v397, %v496
        %498 = vmatprep.mubr.f32.mxu0 %v301
        %499 = vmatmul.mubr.f32.gmra.mxu0 %v300
        %v500 = vpop.f32.mrf.mxu0
        %v501 = vadd.f32 %v393, %v500
        %v502 = vpop.f32.mrf.mxu0
        %v503 = vadd.f32 %v397, %v502
        %504 = vmatprep.mubr.f32.mxu0 %v303
        %505 = vmatmul.mubr.f32.gmra.mxu0 %v302
        %v506 = vpop.f32.mrf.mxu0
        %v507 = vadd.f32 %v393, %v506
        %v508 = vpop.f32.mrf.mxu0
        %v509 = vadd.f32 %v397, %v508
        %510 = vmatprep.mubr.f32.mxu0 %v305
        %511 = vmatmul.mubr.f32.gmra.mxu0 %v304
        %v512 = vpop.f32.mrf.mxu0
        %v513 = vadd.f32 %v393, %v512
        %v514 = vpop.f32.mrf.mxu0
        %v515 = vadd.f32 %v397, %v514
        %516 = vmatprep.mubr.f32.mxu0 %v307
        %517 = vmatmul.mubr.f32.gmra.mxu0 %v306
        %v518 = vpop.f32.mrf.mxu0
        %v519 = vadd.f32 %v393, %v518
        %v520 = vpop.f32.mrf.mxu0
        %v521 = vadd.f32 %v397, %v520
        %522 = vmatprep.mubr.f32.mxu0 %v309
        %523 = vmatmul.mubr.f32.gmra.mxu0 %v308
        %v524 = vpop.f32.mrf.mxu0
        %v525 = vadd.f32 %v393, %v524
        %v526 = vpop.f32.mrf.mxu0
        %v527 = vadd.f32 %v397, %v526
        %528 = vmatprep.mubr.f32.mxu0 %v311
        %529 = vmatmul.mubr.f32.gmra.mxu0 %v310
        %v530 = vpop.f32.mrf.mxu0
        %v531 = vadd.f32 %v393, %v530
        %v532 = vpop.f32.mrf.mxu0
        %v533 = vadd.f32 %v397, %v532
        %534 = vmatprep.mubr.f32.mxu0 %v313
        %535 = vmatmul.mubr.f32.gmra.mxu0 %v312
        %v536 = vpop.f32.mrf.mxu0
        %v537 = vadd.f32 %v393, %v536
        %v538 = vpop.f32.mrf.mxu0
        %v539 = vadd.f32 %v397, %v538
        %540 = vdwg.mxu0
        %v541 = vld [vmem:[%s247] sm:$0xff]
        %v542 = vld [vmem:[%s247 + $0x8] sm:$0xff]
        %v543 = vld [vmem:[%s247 + $0x10] sm:$0xff]
        %v544 = vld [vmem:[%s247 + $0x18] sm:$0xff]
        %v545 = vld [vmem:[%s247 + $0x20] sm:$0xff]
        %v546 = vld [vmem:[%s247 + $0x28] sm:$0xff]
        %v547 = vld [vmem:[%s247 + $0x30] sm:$0xff]
        %v548 = vld [vmem:[%s247 + $0x38] sm:$0xff]
        %v549 = vld [vmem:[%s247 + $0x40] sm:$0xff]
        %v550 = vld [vmem:[%s247 + $0x48] sm:$0xff]
        %v551 = vld [vmem:[%s247 + $0x50] sm:$0xff]
        %v552 = vld [vmem:[%s247 + $0x58] sm:$0xff]
        %v553 = vld [vmem:[%s247 + $0x60] sm:$0xff]
        %v554 = vld [vmem:[%s247 + $0x68] sm:$0xff]
        %v555 = vld [vmem:[%s247 + $0x70] sm:$0xff]
        %v556 = vld [vmem:[%s247 + $0x78] sm:$0xff]
        %v557 = vld [vmem:[%s247 + $0x80] sm:$0xff]
        %v558 = vld [vmem:[%s247 + $0x88] sm:$0xff]
        %v559 = vld [vmem:[%s247 + $0x90] sm:$0xff]
        %v560 = vld [vmem:[%s247 + $0x98] sm:$0xff]
        %v561 = vld [vmem:[%s247 + $0xa0] sm:$0xff]
        %v562 = vld [vmem:[%s247 + $0xa8] sm:$0xff]
        %v563 = vld [vmem:[%s247 + $0xb0] sm:$0xff]
        %v564 = vld [vmem:[%s247 + $0xb8] sm:$0xff]
        %v565 = vld [vmem:[%s247 + $0xc0] sm:$0xff]
        %v566 = vld [vmem:[%s247 + $0xc8] sm:$0xff]
        %v567 = vadd.f32 %v465, %v541
        %v568 = vadd.f32 %v467, %v542
        %v569 = vadd.f32 %v471, %v543
        %v570 = vadd.f32 %v473, %v544
        %v571 = vadd.f32 %v477, %v545
        %v572 = vadd.f32 %v479, %v546
        %v573 = vadd.f32 %v483, %v547
        %v574 = vadd.f32 %v485, %v548
        %v575 = vadd.f32 %v489, %v549
        %v576 = vadd.f32 %v491, %v550
        %v577 = vadd.f32 %v495, %v551
        %v578 = vadd.f32 %v497, %v552
        %v579 = vadd.f32 %v501, %v553
        %v580 = vadd.f32 %v503, %v554
        %v581 = vadd.f32 %v507, %v555
        %v582 = vadd.f32 %v509, %v556
        %v583 = vadd.f32 %v513, %v557
        %v584 = vadd.f32 %v515, %v558
        %v585 = vadd.f32 %v519, %v559
        %v586 = vadd.f32 %v521, %v560
        %v587 = vadd.f32 %v525, %v561
        %v588 = vadd.f32 %v527, %v562
        %v589 = vadd.f32 %v531, %v563
        %v590 = vadd.f32 %v533, %v564
        %v591 = vadd.f32 %v537, %v565
        %v592 = vadd.f32 %v539, %v566
        %v593 = vadd.f32 %v567, %v568
        %594 = vadd.xlane.f32.xlu0 %v593
        %v595 = vpop.xlane.xlu0 %594
        %v596 = vadd.f32 %v569, %v570
        %597 = vadd.xlane.f32.xlu0 %v596
        %v598 = vpop.xlane.xlu0 %597
        %v599 = vadd.f32 %v571, %v572
        %600 = vadd.xlane.f32.xlu0 %v599
        %v601 = vpop.xlane.xlu0 %600
        %v602 = vadd.f32 %v573, %v574
        %603 = vadd.xlane.f32.xlu0 %v602
        %v604 = vpop.xlane.xlu0 %603
        %v605 = vadd.f32 %v575, %v576
        %606 = vadd.xlane.f32.xlu0 %v605
        %v607 = vpop.xlane.xlu0 %606
        %v608 = vadd.f32 %v577, %v578
        %609 = vadd.xlane.f32.xlu0 %v608
        %v610 = vpop.xlane.xlu0 %609
        %v611 = vadd.f32 %v579, %v580
        %612 = vadd.xlane.f32.xlu0 %v611
        %v613 = vpop.xlane.xlu0 %612
        %v614 = vadd.f32 %v581, %v582
        %615 = vadd.xlane.f32.xlu0 %v614
        %v616 = vpop.xlane.xlu0 %615
        %v617 = vadd.f32 %v583, %v584
        %618 = vadd.xlane.f32.xlu0 %v617
        %v619 = vpop.xlane.xlu0 %618
        %v620 = vadd.f32 %v585, %v586
        %621 = vadd.xlane.f32.xlu0 %v620
        %v622 = vpop.xlane.xlu0 %621
        %v623 = vadd.f32 %v587, %v588
        %624 = vadd.xlane.f32.xlu0 %v623
        %v625 = vpop.xlane.xlu0 %624
        %v626 = vadd.f32 %v589, %v590
        %627 = vadd.xlane.f32.xlu0 %v626
        %v628 = vpop.xlane.xlu0 %627
        %v629 = vadd.f32 %v591, %v592
        %630 = vadd.xlane.f32.xlu0 %v629
        %v631 = vpop.xlane.xlu0 %630
        %v632 = vrcp.pop 256.0
        %v633 = vmul.f32 %v595, %v632
        %v634 = vmul.f32 %v598, %v632
        %v635 = vmul.f32 %v601, %v632
        %v636 = vmul.f32 %v604, %v632
        %v637 = vmul.f32 %v607, %v632
        %v638 = vmul.f32 %v610, %v632
        %v639 = vmul.f32 %v613, %v632
        %v640 = vmul.f32 %v616, %v632
        %v641 = vmul.f32 %v619, %v632
        %v642 = vmul.f32 %v622, %v632
        %v643 = vmul.f32 %v625, %v632
        %v644 = vmul.f32 %v628, %v632
        %v645 = vmul.f32 %v631, %v632
        %v646 = vmul.f32 %v567, %v567
        %v647 = vmul.f32 %v568, %v568
        %v648 = vmul.f32 %v569, %v569
        %v649 = vmul.f32 %v570, %v570
        %v650 = vmul.f32 %v571, %v571
        %v651 = vmul.f32 %v572, %v572
        %v652 = vmul.f32 %v573, %v573
        %v653 = vmul.f32 %v574, %v574
        %v654 = vmul.f32 %v575, %v575
        %v655 = vmul.f32 %v576, %v576
        %v656 = vmul.f32 %v577, %v577
        %v657 = vmul.f32 %v578, %v578
        %v658 = vmul.f32 %v579, %v579
        %v659 = vmul.f32 %v580, %v580
        %v660 = vmul.f32 %v581, %v581
        %v661 = vmul.f32 %v582, %v582
        %v662 = vmul.f32 %v583, %v583
        %v663 = vmul.f32 %v584, %v584
        %v664 = vmul.f32 %v585, %v585
        %v665 = vmul.f32 %v586, %v586
        %v666 = vmul.f32 %v587, %v587
        %v667 = vmul.f32 %v588, %v588
        %v668 = vmul.f32 %v589, %v589
        %v669 = vmul.f32 %v590, %v590
        %v670 = vmul.f32 %v591, %v591
        %v671 = vmul.f32 %v592, %v592
        %v672 = vadd.f32 %v646, %v647
        %673 = vadd.xlane.f32.xlu0 %v672
        %v674 = vpop.xlane.xlu0 %673
        %v675 = vadd.f32 %v648, %v649
        %676 = vadd.xlane.f32.xlu0 %v675
        %v677 = vpop.xlane.xlu0 %676
        %v678 = vadd.f32 %v650, %v651
        %679 = vadd.xlane.f32.xlu0 %v678
        %v680 = vpop.xlane.xlu0 %679
        %v681 = vadd.f32 %v652, %v653
        %682 = vadd.xlane.f32.xlu0 %v681
        %v683 = vpop.xlane.xlu0 %682
        %v684 = vadd.f32 %v654, %v655
        %685 = vadd.xlane.f32.xlu0 %v684
        %v686 = vpop.xlane.xlu0 %685
        %v687 = vadd.f32 %v656, %v657
        %688 = vadd.xlane.f32.xlu0 %v687
        %v689 = vpop.xlane.xlu0 %688
        %v690 = vadd.f32 %v658, %v659
        %691 = vadd.xlane.f32.xlu0 %v690
        %v692 = vpop.xlane.xlu0 %691
        %v693 = vadd.f32 %v660, %v661
        %694 = vadd.xlane.f32.xlu0 %v693
        %v695 = vpop.xlane.xlu0 %694
        %v696 = vadd.f32 %v662, %v663
        %697 = vadd.xlane.f32.xlu0 %v696
        %v698 = vpop.xlane.xlu0 %697
        %v699 = vadd.f32 %v664, %v665
        %700 = vadd.xlane.f32.xlu0 %v699
        %v701 = vpop.xlane.xlu0 %700
        %v702 = vadd.f32 %v666, %v667
        %703 = vadd.xlane.f32.xlu0 %v702
        %v704 = vpop.xlane.xlu0 %703
        %v705 = vadd.f32 %v668, %v669
        %706 = vadd.xlane.f32.xlu0 %v705
        %v707 = vpop.xlane.xlu0 %706
        %v708 = vadd.f32 %v670, %v671
        %709 = vadd.xlane.f32.xlu0 %v708
        %v710 = vpop.xlane.xlu0 %709
        %v711 = vmul.f32 %v674, %v632
        %v712 = vmul.f32 %v677, %v632
        %v713 = vmul.f32 %v680, %v632
        %v714 = vmul.f32 %v683, %v632
        %v715 = vmul.f32 %v686, %v632
        %v716 = vmul.f32 %v689, %v632
        %v717 = vmul.f32 %v692, %v632
        %v718 = vmul.f32 %v695, %v632
        %v719 = vmul.f32 %v698, %v632
        %v720 = vmul.f32 %v701, %v632
        %v721 = vmul.f32 %v704, %v632
        %v722 = vmul.f32 %v707, %v632
        %v723 = vmul.f32 %v710, %v632
        %v724 = vmul.f32 %v633, %v633
        %v725 = vmul.f32 %v634, %v634
        %v726 = vmul.f32 %v635, %v635
        %v727 = vmul.f32 %v636, %v636
        %v728 = vmul.f32 %v637, %v637
        %v729 = vmul.f32 %v638, %v638
        %v730 = vmul.f32 %v639, %v639
        %v731 = vmul.f32 %v640, %v640
        %v732 = vmul.f32 %v641, %v641
        %v733 = vmul.f32 %v642, %v642
        %v734 = vmul.f32 %v643, %v643
        %v735 = vmul.f32 %v644, %v644
        %v736 = vmul.f32 %v645, %v645
        %v737 = vsub.f32 %v711, %v724
        %v738 = vsub.f32 %v712, %v725
        %v739 = vsub.f32 %v713, %v726
        %v740 = vsub.f32 %v714, %v727
        %v741 = vsub.f32 %v715, %v728
        %v742 = vsub.f32 %v716, %v729
        %v743 = vsub.f32 %v717, %v730
        %v744 = vsub.f32 %v718, %v731
        %v745 = vsub.f32 %v719, %v732
        %v746 = vsub.f32 %v720, %v733
        %v747 = vsub.f32 %v721, %v734
        %v748 = vsub.f32 %v722, %v735
        %v749 = vsub.f32 %v723, %v736
        %v750 = vmax.f32 %v737, 0.0
        %v751 = vmax.f32 %v738, 0.0
        %v752 = vmax.f32 %v739, 0.0
        %v753 = vmax.f32 %v740, 0.0
        %v754 = vmax.f32 %v741, 0.0
        %v755 = vmax.f32 %v742, 0.0
        %v756 = vmax.f32 %v743, 0.0
        %v757 = vmax.f32 %v744, 0.0
        %v758 = vmax.f32 %v745, 0.0
        %v759 = vmax.f32 %v746, 0.0
        %v760 = vmax.f32 %v747, 0.0
        %v761 = vmax.f32 %v748, 0.0
        %v762 = vmax.f32 %v749, 0.0
        %v763 = vadd.f32 %v750, 1e-05
        %v764 = vadd.f32 %v751, 1e-05
        %v765 = vadd.f32 %v752, 1e-05
        %v766 = vadd.f32 %v753, 1e-05
        %v767 = vadd.f32 %v754, 1e-05
        %v768 = vadd.f32 %v755, 1e-05
        %v769 = vadd.f32 %v756, 1e-05
        %v770 = vadd.f32 %v757, 1e-05
        %v771 = vadd.f32 %v758, 1e-05
        %v772 = vadd.f32 %v759, 1e-05
        %v773 = vadd.f32 %v760, 1e-05
        %v774 = vadd.f32 %v761, 1e-05
        %v775 = vadd.f32 %v762, 1e-05
        %v776 = vrsqrt.pop %v763
        %v777 = vrsqrt.pop %v764
        %v778 = vrsqrt.pop %v765
        %v779 = vrsqrt.pop %v766
        %v780 = vrsqrt.pop %v767
        %v781 = vrsqrt.pop %v768
        %v782 = vrsqrt.pop %v769
        %v783 = vrsqrt.pop %v770
        %v784 = vrsqrt.pop %v771
        %v785 = vrsqrt.pop %v772
        %v786 = vrsqrt.pop %v773
        %v787 = vrsqrt.pop %v774
        %v788 = vrsqrt.pop %v775
        %v789 = vsub.f32 %v567, %v633
        %v790 = vsub.f32 %v568, %v633
        %v791 = vsub.f32 %v569, %v634
        %v792 = vsub.f32 %v570, %v634
        %v793 = vsub.f32 %v571, %v635
        %v794 = vsub.f32 %v572, %v635
        %v795 = vsub.f32 %v573, %v636
        %v796 = vsub.f32 %v574, %v636
        %v797 = vsub.f32 %v575, %v637
        %v798 = vsub.f32 %v576, %v637
        %v799 = vsub.f32 %v577, %v638
        %v800 = vsub.f32 %v578, %v638
        %v801 = vsub.f32 %v579, %v639
        %v802 = vsub.f32 %v580, %v639
        %v803 = vsub.f32 %v581, %v640
        %v804 = vsub.f32 %v582, %v640
        %v805 = vsub.f32 %v583, %v641
        %v806 = vsub.f32 %v584, %v641
        %v807 = vsub.f32 %v585, %v642
        %v808 = vsub.f32 %v586, %v642
        %v809 = vsub.f32 %v587, %v643
        %v810 = vsub.f32 %v588, %v643
        %v811 = vsub.f32 %v589, %v644
        %v812 = vsub.f32 %v590, %v644
        %v813 = vsub.f32 %v591, %v645
        %v814 = vsub.f32 %v592, %v645
        %v815 = vmul.f32 %v789, %v776
        %v816 = vmul.f32 %v790, %v776
        %v817 = vmul.f32 %v791, %v777
        %v818 = vmul.f32 %v792, %v777
        %v819 = vmul.f32 %v793, %v778
        %v820 = vmul.f32 %v794, %v778
        %v821 = vmul.f32 %v795, %v779
        %v822 = vmul.f32 %v796, %v779
        %v823 = vmul.f32 %v797, %v780
        %v824 = vmul.f32 %v798, %v780
        %v825 = vmul.f32 %v799, %v781
        %v826 = vmul.f32 %v800, %v781
        %v827 = vmul.f32 %v801, %v782
        %v828 = vmul.f32 %v802, %v782
        %v829 = vmul.f32 %v803, %v783
        %v830 = vmul.f32 %v804, %v783
        %v831 = vmul.f32 %v805, %v784
        %v832 = vmul.f32 %v806, %v784
        %v833 = vmul.f32 %v807, %v785
        %v834 = vmul.f32 %v808, %v785
        %v835 = vmul.f32 %v809, %v786
        %v836 = vmul.f32 %v810, %v786
        %v837 = vmul.f32 %v811, %v787
        %v838 = vmul.f32 %v812, %v787
        %v839 = vmul.f32 %v813, %v788
        %v840 = vmul.f32 %v814, %v788
        %v841 = vlaneseq
        %v842 = vshrl.u32 %v841, 7
        %v843 = vsub.s32 1, %v842
        %v844 = vrot.slane %v378, %v843
        %v845 = vlaneseq
        %v846 = vshrl.u32 %v845, 7
        %v847 = vsub.s32 5, %v846
        %v848 = vrot.slane %v378, %v847
        %v851 = vlaneseq
        %v852 = vshrl.u32 %v851, 7
        %v853 = vsub.s32 1, %v852
        %v854 = vrot.slane %v844, %v853
        %v855 = vlaneseq
        %v856 = vshrl.u32 %v855, 7
        %v857 = vsub.s32 1, %v856
        %v858 = vrot.slane %v848, %v857
        %v859 = vmul.f32 %v815, %v854
        %v860 = vmul.f32 %v816, %v858
        %v861 = vmul.f32 %v817, %v854
        %v862 = vmul.f32 %v818, %v858
        %v863 = vmul.f32 %v819, %v854
        %v864 = vmul.f32 %v820, %v858
        %v865 = vmul.f32 %v821, %v854
        %v866 = vmul.f32 %v822, %v858
        %v867 = vmul.f32 %v823, %v854
        %v868 = vmul.f32 %v824, %v858
        %v869 = vmul.f32 %v825, %v854
        %v870 = vmul.f32 %v826, %v858
        %v871 = vmul.f32 %v827, %v854
        %v872 = vmul.f32 %v828, %v858
        %v873 = vmul.f32 %v829, %v854
        %v874 = vmul.f32 %v830, %v858
        %v875 = vmul.f32 %v831, %v854
        %v876 = vmul.f32 %v832, %v858
        %v877 = vmul.f32 %v833, %v854
        %v878 = vmul.f32 %v834, %v858
        %v879 = vmul.f32 %v835, %v854
        %v880 = vmul.f32 %v836, %v858
        %v881 = vmul.f32 %v837, %v854
        %v882 = vmul.f32 %v838, %v858
        %v883 = vmul.f32 %v839, %v854
        %v884 = vmul.f32 %v840, %v858
        %v885 = vlaneseq
        %v886 = vshrl.u32 %v885, 7
        %v887 = vsub.s32 2, %v886
        %v888 = vrot.slane %v378, %v887
        %v889 = vlaneseq
        %v890 = vshrl.u32 %v889, 7
        %v891 = vsub.s32 6, %v890
        %v892 = vrot.slane %v378, %v891
        %v895 = vlaneseq
        %v896 = vshrl.u32 %v895, 7
        %v897 = vsub.s32 2, %v896
        %v898 = vrot.slane %v888, %v897
        %v899 = vlaneseq
        %v900 = vshrl.u32 %v899, 7
        %v901 = vsub.s32 2, %v900
        %v902 = vrot.slane %v892, %v901
        %v903 = vadd.f32 %v859, %v898
        %v904 = vadd.f32 %v860, %v902
        %v905 = vadd.f32 %v861, %v898
        %v906 = vadd.f32 %v862, %v902
        %v907 = vadd.f32 %v863, %v898
        %v908 = vadd.f32 %v864, %v902
        %v909 = vadd.f32 %v865, %v898
        %v910 = vadd.f32 %v866, %v902
        %v911 = vadd.f32 %v867, %v898
        %v912 = vadd.f32 %v868, %v902
        %v913 = vadd.f32 %v869, %v898
        %v914 = vadd.f32 %v870, %v902
        %v915 = vadd.f32 %v871, %v898
        %v916 = vadd.f32 %v872, %v902
        %v917 = vadd.f32 %v873, %v898
        %v918 = vadd.f32 %v874, %v902
        %v919 = vadd.f32 %v875, %v898
        %v920 = vadd.f32 %v876, %v902
        %v921 = vadd.f32 %v877, %v898
        %v922 = vadd.f32 %v878, %v902
        %v923 = vadd.f32 %v879, %v898
        %v924 = vadd.f32 %v880, %v902
        %v925 = vadd.f32 %v881, %v898
        %v926 = vadd.f32 %v882, %v902
        %v927 = vadd.f32 %v883, %v898
        %v928 = vadd.f32 %v884, %v902
        %929 = vst [vmem:[%s284] sm:$0xff] %v903
        %930 = vst [vmem:[%s284 + $0x8] sm:$0xff] %v904
        %931 = vst [vmem:[%s284 + $0x10] sm:$0xff] %v905
        %932 = vst [vmem:[%s284 + $0x18] sm:$0xff] %v906
        %933 = vst [vmem:[%s284 + $0x20] sm:$0xff] %v907
        %934 = vst [vmem:[%s284 + $0x28] sm:$0xff] %v908
        %935 = vst [vmem:[%s284 + $0x30] sm:$0xff] %v909
        %936 = vst [vmem:[%s284 + $0x38] sm:$0xff] %v910
        %937 = vst [vmem:[%s284 + $0x40] sm:$0xff] %v911
        %938 = vst [vmem:[%s284 + $0x48] sm:$0xff] %v912
        %939 = vst [vmem:[%s284 + $0x50] sm:$0xff] %v913
        %940 = vst [vmem:[%s284 + $0x58] sm:$0xff] %v914
        %941 = vst [vmem:[%s284 + $0x60] sm:$0xff] %v915
        %942 = vst [vmem:[%s284 + $0x68] sm:$0xff] %v916
        %943 = vst [vmem:[%s284 + $0x70] sm:$0xff] %v917
        %944 = vst [vmem:[%s284 + $0x78] sm:$0xff] %v918
        %945 = vst [vmem:[%s284 + $0x80] sm:$0xff] %v919
        %946 = vst [vmem:[%s284 + $0x88] sm:$0xff] %v920
        %947 = vst [vmem:[%s284 + $0x90] sm:$0xff] %v921
        %948 = vst [vmem:[%s284 + $0x98] sm:$0xff] %v922
        %949 = vst [vmem:[%s284 + $0xa0] sm:$0xff] %v923
        %950 = vst [vmem:[%s284 + $0xa8] sm:$0xff] %v924
        %951 = vst [vmem:[%s284 + $0xb0] sm:$0xff] %v925
        %952 = vst [vmem:[%s284 + $0xb8] sm:$0xff] %v926
        %953 = vst [vmem:[%s284 + $0xc0] sm:$0xff] %v927
        %954 = vst [vmem:[%s284 + $0xc8] sm:$0xff] %v928
        %s955 = sand.u32 %s127, 1
        %s956 = scalar_lea.sflag [#allocation4], %s955
        %s957 = sand.u32 %s127, 1
        %s958 = smul.addr %s957, 208
        %s959 = scalar_lea.vmem [#allocation10], %s958
        // Predicated region
        $region53: #{tpu_custom_call.1} parent=35 // pred_check
          %p960 = pneg %p137
        $region54: #{tpu_custom_call.1} parent=35 // pred_check_branch
          %962 = sbr.rel (%p960) target = $region56
        $region55: #{tpu_custom_call.1} parent=35 // pred_region
          %s963 = smul.u32 13, %s25
          %s965 = ssub.s32 3328, 3328
          %966 = vsyncadd %s956, %s965
          %s967 = smul.addr %s963, 2
          %s968 = smul.addr %s967, 128
          %s969 = scalar_lea.hbm %s4, %s968
          %s970 = sshll.u32 %s959, 4
          %s971 = int_to_ptr.vmem [resolvable:$true] %s970
          %976 = dma.vmem_to_hbm [thread:$0]  %s971, 3328, %s969, %s956, 256, 256, 16
        $region56: #{tpu_custom_call.1} parent=35 // pred_fallthru
          _
      $region36: #{tpu_custom_call.1} parent=5 // pred_fallthru
        _
      %p977 = scmp.le.s32.totalorder 2, %s20
      // Predicated region
      $region57: #{tpu_custom_call.1} parent=5 // pred_check
        %p978 = pneg %p977
      $region58: #{tpu_custom_call.1} parent=5 // pred_check_branch
        %980 = sbr.rel (%p978) target = $region60
      $region59: #{tpu_custom_call.1} parent=5 // pred_region
        %s981 = ssub.s32 %s20, 2
        // Predicated region
        $region61: #{tpu_custom_call.1} parent=59 // pred_check
          %p982 = pneg %p143
        $region62: #{tpu_custom_call.1} parent=59 // pred_check_branch
          %984 = sbr.rel (%p982) target = $region64
        $region63: #{tpu_custom_call.1} parent=59 // pred_region
          %s985 = sand.u32 %s128, 1
          %s986 = scalar_lea.sflag [#allocation4], %s985
          %s987 = sand.u32 %s128, 1
          %s988 = smul.addr %s987, 208
          %s989 = scalar_lea.vmem [#allocation10], %s988
          %990 = dma.done %s986, 3328
        $region64: #{tpu_custom_call.1} parent=59 // pred_fallthru
          _
      $region60: #{tpu_custom_call.1} parent=5 // pred_fallthru
        _
    $region6: #{tpu_custom_call.1} parent=1 // loop_footer
      %s24 = sadd.s32 1, %s20
    $region7: #{tpu_custom_call.1} parent=1 // loop_footer_branch
      %19 = sbr.rel target = $region3
    $region8: #{tpu_custom_call.1} parent=1 // loop_exit
      _
    %991 = vsyncpa [#allocation3], 1
    %s992 = scalar_lea.sflag [#allocation3], 1
    %993 = vsyncpa %s992, 1
    %994 = vsyncpa [#allocation6], 1
    %s995 = scalar_lea.sflag [#allocation6], 1
    %996 = vsyncpa %s995, 1
    %997 = vsyncpa [#allocation9], 1
    %998 = vsyncpa [#allocation4], 1
    %s999 = scalar_lea.sflag [#allocation4], 1
    %1000 = vsyncpa %s999, 1

</llo_original>
